<compile_context>
chip_gen: v7x
topology: tpu7x:2x2x1
jax: 0.10.0
libtpu: 0.0.40
codegen_flags: <defaults>
</compile_context>

<pallas_src>
import jax
import jax.numpy as jnp
import numpy as np
from jax import lax
from jax.experimental import pallas as pl
from jax.experimental.pallas import tpu as pltpu


def _temporal_att_kernel(x_ref, w1_ref, w2_ref, o_ref, s_ref):
    # x_ref, o_ref : (T, C, S)  -- batch dim squeezed; S (spatial) is the lane axis
    # w1_ref       : (d, C)     -- w_s1.weight, in the input dtype (MXU-native)
    # w2_ref       : (d, 1)     -- w_s2.weight transposed (r == 1)
    # s_ref        : (T, S) f32 -- VMEM scratch: scores, then attention weights
    T, C, S = x_ref.shape
    unroll = min(T, 8)

    w1 = w1_ref[...]                                  # (d, C), input dtype
    w2_col = w2_ref[...].astype(jnp.float32)          # (d, 1), lane-replicated

    # scores[t, s] = sum_d w2[d] * tanh(sum_c w1[d, c] * x[t, c, s])
    def score_body(t, carry):
        xt = x_ref[t]                                                       # (C, S)
        zt = jnp.tanh(jnp.dot(w1, xt, preferred_element_type=jnp.float32))  # (d, S) MXU
        # r == 1 projection: VPU multiply with a lane-replicated (d, 1) operand
        # + cross-sublane reduce; no (d, S) weight broadcast is materialized.
        s_ref[pl.ds(t, 1), :] = jnp.sum(zt * w2_col, axis=0, keepdims=True)
        return carry

    lax.fori_loop(0, T, score_body, 0, unroll=unroll)

    # softmax over the time axis (dim=1 of the PyTorch module)
    scores = s_ref[...]                                # (T, S) f32
    m = jnp.max(scores, axis=0, keepdims=True)         # (1, S)
    e = jnp.exp(scores - m)                            # (T, S)  (EUP)
    inv = pl.reciprocal(jnp.sum(e, axis=0, keepdims=True), approx=True)   # EUP
    s_ref[...] = e * inv                               # attention weights, in place

    # reweight: out[t, c, s] = attn[t, s] * x[t, c, s]  (broadcast over C)
    def reweight_body(t, carry):
        a_t = s_ref[pl.ds(t, 1), :].astype(o_ref.dtype)   # (1, S)
        o_ref[t] = a_t * x_ref[t]                          # (C, S), input dtype
        return carry

    lax.fori_loop(0, T, reweight_body, 0, unroll=unroll)


def _pick_spatial_tile(S, bytes_per_col, target_block_bytes, B):
    """Lane-dense spatial tile: a multiple of 128, or the full spatial dim."""
    cap = max(128, ((target_block_bytes // max(bytes_per_col, 1)) // 128) * 128)
    # Full-S block (block dim == array dim, always legal) when it fits the budget,
    # otherwise a multiple-of-128 tile with a cdiv grid (edge block padded/masked).
    s_tile = S if S <= cap else cap

    def shrink(t):
        return max(128, ((t // 2) // 128) * 128)

    # v7x has 2 TensorCores sharing the parallel grid: aim for >= 4 grid steps,
    # but never shrink below 512 lanes for it (protects v5e/v6e DMA efficiency).
    while B * pl.cdiv(S, s_tile) < 4 and s_tile > 512:
        s_tile = shrink(s_tile)
    # Always try for >= 2 steps so both cores get work at all.
    while B * pl.cdiv(S, s_tile) < 2 and s_tile > 128:
        s_tile = shrink(s_tile)
    return s_tile


def temporal_att_pallas(hidden_states, w1, w2, *, target_block_bytes=4 * 1024 * 1024):
    """hidden_states: (B, T, C, H, W);  w1: (d, C);  w2: (r, d) with r == 1."""
    B, T, C, H, W = hidden_states.shape
    d, c_in = w1.shape
    r, d_in = w2.shape
    assert c_in == C and d_in == d
    # PyTorch's `attn_weights * hidden_states` broadcast only makes sense for
    # r == 1 (or r == C); this kernel implements the standard r == 1 case.
    assert r == 1, "TemporalAtt Pallas kernel supports r == 1 only"
    # TODO(synk): add an r == C variant if that configuration is ever used.

    S = H * W
    itemsize = jnp.dtype(hidden_states.dtype).itemsize
    # Cap the block target so 2x double-buffered (in + out) stays v7x-safe
    # (64 MiB physical VMEM, 32 MiB scoped default).
    target_block_bytes = min(int(target_block_bytes), 8 * 1024 * 1024)
    s_tile = _pick_spatial_tile(S, T * C * itemsize, target_block_bytes, B)
    grid = (B, pl.cdiv(S, s_tile))

    # Explicit VMEM budget: in + out double-buffered, scores scratch, intermediates.
    block_bytes = T * C * s_tile * itemsize
    scratch_bytes = T * s_tile * 4
    interm_bytes = (d + 4 * T) * s_tile * 4
    est_bytes = 4 * block_bytes + scratch_bytes + interm_bytes
    vmem_limit = int(min(max(32 << 20, est_bytes + (8 << 20)), 48 << 20))

    x = hidden_states.reshape(B, T, C, S)          # free reshape (merges H, W)
    w1_x = w1.astype(hidden_states.dtype)          # MXU-native operand dtype (bf16 stays bf16)
    w2_t = jnp.transpose(w2).astype(jnp.float32)   # (d, 1) -- tiny; avoids in-kernel relayout

    out = pl.pallas_call(
        _temporal_att_kernel,
        out_shape=jax.ShapeDtypeStruct((B, T, C, S), hidden_states.dtype),
        grid_spec=pltpu.PrefetchScalarGridSpec(
            num_scalar_prefetch=0,
            grid=grid,
            in_specs=[
                pl.BlockSpec((None, T, C, s_tile), lambda b, s: (b, 0, 0, s)),
                pl.BlockSpec((d, C), lambda b, s: (0, 0)),
                pl.BlockSpec((d, 1), lambda b, s: (0, 0)),
            ],
            out_specs=pl.BlockSpec((None, T, C, s_tile), lambda b, s: (b, 0, 0, s)),
            scratch_shapes=[pltpu.VMEM((T, s_tile), jnp.float32)],
        ),
        compiler_params=pltpu.CompilerParams(
            dimension_semantics=("parallel", "parallel"),
            vmem_limit_bytes=vmem_limit,
        ),
    )(x, w1_x, w2_t)

    return out.reshape(B, T, C, H, W)              # free reshape (splits S back to H, W)


def temporal_att_reference(hidden_states, w1, w2):
    """Pure-JAX reference mirroring the PyTorch forward."""
    hs = jnp.transpose(hidden_states, (0, 1, 3, 4, 2))          # (B, T, H, W, C)
    z1 = jnp.tanh(jnp.einsum("bthwc,dc->bthwd", hs, w1))
    attn = jax.nn.softmax(jnp.einsum("bthwd,rd->bthwr", z1, w2), axis=1)
    out = attn * hs
    return jnp.transpose(out, (0, 1, 4, 2, 3))                  # (B, T, C, H, W)


if __name__ == "__main__":
    # Small, deterministic example consistent with the module's contract.
    B, T, C, H, W = 2, 8, 32, 16, 16   # batch, time, hidden_dim_size, height, width
    d, r = 16, 1                       # attention dims (r = 1 matches the broadcast)

    key = jax.random.PRNGKey(0)
    k_x, k_w1, k_w2 = jax.random.split(key, 3)
    hidden_states = jax.random.normal(k_x, (B, T, C, H, W), dtype=jnp.float32)

    # Check 1: the module's init (nn.init.constant_(weight, 1), bias=False).
    w1_ones = jnp.ones((d, C), dtype=jnp.float32)
    w2_ones = jnp.ones((r, d), dtype=jnp.float32)
    out = jax.block_until_ready(temporal_att_pallas(hidden_states, w1_ones, w2_ones))
    ref = jax.block_until_ready(temporal_att_reference(hidden_states, w1_ones, w2_ones))
    np.testing.assert_allclose(np.asarray(out), np.asarray(ref), rtol=3e-3, atol=3e-3)

    # Check 2: general (trained-like) weights.
    w1_rnd = 0.5 * jax.random.normal(k_w1, (d, C), dtype=jnp.float32)
    w2_rnd = 0.5 * jax.random.normal(k_w2, (r, d), dtype=jnp.float32)
    out2 = jax.block_until_ready(temporal_att_pallas(hidden_states, w1_rnd, w2_rnd))
    ref2 = jax.block_until_ready(temporal_att_reference(hidden_states, w1_rnd, w2_rnd))
    np.testing.assert_allclose(np.asarray(out2), np.asarray(ref2), rtol=3e-3, atol=3e-3)

    print("KERNEL_OK")
</pallas_src>

<mosaic_0001>
module attributes {stable_mosaic.version = 11 : i64} {
  func.func @_temporal_att_kernel(%arg0: i32, %arg1: i32, %arg2: memref<1x8x32x256xf32, #tpu.memory_space<vmem>>, %arg3: memref<16x32xf32, #tpu.memory_space<vmem>>, %arg4: memref<16x1xf32, #tpu.memory_space<vmem>>, %arg5: memref<1x8x32x256xf32, #tpu.memory_space<vmem>>, %arg6: memref<8x256xf32, #tpu.memory_space<vmem>>) attributes {dimension_semantics = [#tpu.dimension_semantics<parallel>, #tpu.dimension_semantics<parallel>], iteration_bounds = array<i64: 2, 1>, scalar_prefetch = 0 : i64, scratch_operands = 1 : i64, tpu.core_type = #tpu.core_type<tc>, window_params = [{transform_indices = @transform_0, window_bounds = array<i64: 1, 8, 32, 256>}, {pipeline_mode = #tpu.pipeline_mode<synchronous>, transform_indices = @transform_1, window_bounds = array<i64: 16, 32>}, {pipeline_mode = #tpu.pipeline_mode<synchronous>, transform_indices = @transform_2, window_bounds = array<i64: 16, 1>}, {transform_indices = @transform_3, window_bounds = array<i64: 1, 8, 32, 256>}]} {
    %c0 = arith.constant 0 : index
    %c0_0 = arith.constant 0 : index
    %0 = vector.load %arg3[%c0, %c0_0] : memref<16x32xf32, #tpu.memory_space<vmem>>, vector<16x32xf32>
    %c0_1 = arith.constant 0 : index
    %c0_2 = arith.constant 0 : index
    %1 = vector.load %arg4[%c0_1, %c0_2] : memref<16x1xf32, #tpu.memory_space<vmem>>, vector<16x1xf32>
    %c0_i32 = arith.constant 0 : i32
    %c0_3 = arith.constant 0 : index
    %2 = arith.index_cast %c0_i32 : i32 to index
    %c0_4 = arith.constant 0 : index
    %c0_5 = arith.constant 0 : index
    %3 = vector.load %arg2[%c0_3, %2, %c0_4, %c0_5] : memref<1x8x32x256xf32, #tpu.memory_space<vmem>>, vector<1x1x32x256xf32>
    %4 = vector.shape_cast %3 : vector<1x1x32x256xf32> to vector<32x256xf32>
    %cst = arith.constant dense<0.000000e+00> : vector<16x256xf32>
    %5 = tpu.matmul %0, %4, %cst {dimension_numbers = #tpu.dot_dimension_numbers<[1], [0], [0], [1], [0, 0, 1, 1], [], []>} : vector<16x32xf32>, vector<32x256xf32>, vector<16x256xf32> -> vector<16x256xf32>
    %6 = math.tanh %5 : vector<16x256xf32>
    %7 = vector.broadcast %1 : vector<16x1xf32> to vector<16x256xf32>
    %8 = arith.mulf %6, %7 : vector<16x256xf32>
    %cst_6 = arith.constant dense<0.000000e+00> : vector<256xf32>
    %9 = vector.multi_reduction <add>, %8, %cst_6 [0] : vector<16x256xf32> to vector<256xf32>
    %10 = vector.shape_cast %9 : vector<256xf32> to vector<1x256xf32>
    %11 = arith.index_cast %c0_i32 : i32 to index
    %c0_7 = arith.constant 0 : index
    %12 = vector.load %arg6[%11, %c0_7] : memref<8x256xf32, #tpu.memory_space<vmem>>, vector<1x256xf32>
    tpu.vector_store %arg6[%11, %c0_7], %10 {strides = array<i32>} : memref<8x256xf32, #tpu.memory_space<vmem>>, vector<1x256xf32>,
    %c1_i32 = arith.constant 1 : i32
    %c0_8 = arith.constant 0 : index
    %13 = arith.index_cast %c1_i32 : i32 to index
    %c0_9 = arith.constant 0 : index
    %c0_10 = arith.constant 0 : index
    %14 = vector.load %arg2[%c0_8, %13, %c0_9, %c0_10] : memref<1x8x32x256xf32, #tpu.memory_space<vmem>>, vector<1x1x32x256xf32>
    %15 = vector.shape_cast %14 : vector<1x1x32x256xf32> to vector<32x256xf32>
    %cst_11 = arith.constant dense<0.000000e+00> : vector<16x256xf32>
    %16 = tpu.matmul %0, %15, %cst_11 {dimension_numbers = #tpu.dot_dimension_numbers<[1], [0], [0], [1], [0, 0, 1, 1], [], []>} : vector<16x32xf32>, vector<32x256xf32>, vector<16x256xf32> -> vector<16x256xf32>
    %17 = math.tanh %16 : vector<16x256xf32>
    %18 = vector.broadcast %1 : vector<16x1xf32> to vector<16x256xf32>
    %19 = arith.mulf %17, %18 : vector<16x256xf32>
    %cst_12 = arith.constant dense<0.000000e+00> : vector<256xf32>
    %20 = vector.multi_reduction <add>, %19, %cst_12 [0] : vector<16x256xf32> to vector<256xf32>
    %21 = vector.shape_cast %20 : vector<256xf32> to vector<1x256xf32>
    %22 = arith.index_cast %c1_i32 : i32 to index
    %c0_13 = arith.constant 0 : index
    %23 = vector.load %arg6[%22, %c0_13] : memref<8x256xf32, #tpu.memory_space<vmem>>, vector<1x256xf32>
    tpu.vector_store %arg6[%22, %c0_13], %21 {strides = array<i32>} : memref<8x256xf32, #tpu.memory_space<vmem>>, vector<1x256xf32>,
    %c2_i32 = arith.constant 2 : i32
    %c0_14 = arith.constant 0 : index
    %24 = arith.index_cast %c2_i32 : i32 to index
    %c0_15 = arith.constant 0 : index
    %c0_16 = arith.constant 0 : index
    %25 = vector.load %arg2[%c0_14, %24, %c0_15, %c0_16] : memref<1x8x32x256xf32, #tpu.memory_space<vmem>>, vector<1x1x32x256xf32>
    %26 = vector.shape_cast %25 : vector<1x1x32x256xf32> to vector<32x256xf32>
    %cst_17 = arith.constant dense<0.000000e+00> : vector<16x256xf32>
    %27 = tpu.matmul %0, %26, %cst_17 {dimension_numbers = #tpu.dot_dimension_numbers<[1], [0], [0], [1], [0, 0, 1, 1], [], []>} : vector<16x32xf32>, vector<32x256xf32>, vector<16x256xf32> -> vector<16x256xf32>
    %28 = math.tanh %27 : vector<16x256xf32>
    %29 = vector.broadcast %1 : vector<16x1xf32> to vector<16x256xf32>
    %30 = arith.mulf %28, %29 : vector<16x256xf32>
    %cst_18 = arith.constant dense<0.000000e+00> : vector<256xf32>
    %31 = vector.multi_reduction <add>, %30, %cst_18 [0] : vector<16x256xf32> to vector<256xf32>
    %32 = vector.shape_cast %31 : vector<256xf32> to vector<1x256xf32>
    %33 = arith.index_cast %c2_i32 : i32 to index
    %c0_19 = arith.constant 0 : index
    %34 = vector.load %arg6[%33, %c0_19] : memref<8x256xf32, #tpu.memory_space<vmem>>, vector<1x256xf32>
    tpu.vector_store %arg6[%33, %c0_19], %32 {strides = array<i32>} : memref<8x256xf32, #tpu.memory_space<vmem>>, vector<1x256xf32>,
    %c3_i32 = arith.constant 3 : i32
    %c0_20 = arith.constant 0 : index
    %35 = arith.index_cast %c3_i32 : i32 to index
    %c0_21 = arith.constant 0 : index
    %c0_22 = arith.constant 0 : index
    %36 = vector.load %arg2[%c0_20, %35, %c0_21, %c0_22] : memref<1x8x32x256xf32, #tpu.memory_space<vmem>>, vector<1x1x32x256xf32>
    %37 = vector.shape_cast %36 : vector<1x1x32x256xf32> to vector<32x256xf32>
    %cst_23 = arith.constant dense<0.000000e+00> : vector<16x256xf32>
    %38 = tpu.matmul %0, %37, %cst_23 {dimension_numbers = #tpu.dot_dimension_numbers<[1], [0], [0], [1], [0, 0, 1, 1], [], []>} : vector<16x32xf32>, vector<32x256xf32>, vector<16x256xf32> -> vector<16x256xf32>
    %39 = math.tanh %38 : vector<16x256xf32>
    %40 = vector.broadcast %1 : vector<16x1xf32> to vector<16x256xf32>
    %41 = arith.mulf %39, %40 : vector<16x256xf32>
    %cst_24 = arith.constant dense<0.000000e+00> : vector<256xf32>
    %42 = vector.multi_reduction <add>, %41, %cst_24 [0] : vector<16x256xf32> to vector<256xf32>
    %43 = vector.shape_cast %42 : vector<256xf32> to vector<1x256xf32>
    %44 = arith.index_cast %c3_i32 : i32 to index
    %c0_25 = arith.constant 0 : index
    %45 = vector.load %arg6[%44, %c0_25] : memref<8x256xf32, #tpu.memory_space<vmem>>, vector<1x256xf32>
    tpu.vector_store %arg6[%44, %c0_25], %43 {strides = array<i32>} : memref<8x256xf32, #tpu.memory_space<vmem>>, vector<1x256xf32>,
    %c4_i32 = arith.constant 4 : i32
    %c0_26 = arith.constant 0 : index
    %46 = arith.index_cast %c4_i32 : i32 to index
    %c0_27 = arith.constant 0 : index
    %c0_28 = arith.constant 0 : index
    %47 = vector.load %arg2[%c0_26, %46, %c0_27, %c0_28] : memref<1x8x32x256xf32, #tpu.memory_space<vmem>>, vector<1x1x32x256xf32>
    %48 = vector.shape_cast %47 : vector<1x1x32x256xf32> to vector<32x256xf32>
    %cst_29 = arith.constant dense<0.000000e+00> : vector<16x256xf32>
    %49 = tpu.matmul %0, %48, %cst_29 {dimension_numbers = #tpu.dot_dimension_numbers<[1], [0], [0], [1], [0, 0, 1, 1], [], []>} : vector<16x32xf32>, vector<32x256xf32>, vector<16x256xf32> -> vector<16x256xf32>
    %50 = math.tanh %49 : vector<16x256xf32>
    %51 = vector.broadcast %1 : vector<16x1xf32> to vector<16x256xf32>
    %52 = arith.mulf %50, %51 : vector<16x256xf32>
    %cst_30 = arith.constant dense<0.000000e+00> : vector<256xf32>
    %53 = vector.multi_reduction <add>, %52, %cst_30 [0] : vector<16x256xf32> to vector<256xf32>
    %54 = vector.shape_cast %53 : vector<256xf32> to vector<1x256xf32>
    %55 = arith.index_cast %c4_i32 : i32 to index
    %c0_31 = arith.constant 0 : index
    %56 = vector.load %arg6[%55, %c0_31] : memref<8x256xf32, #tpu.memory_space<vmem>>, vector<1x256xf32>
    tpu.vector_store %arg6[%55, %c0_31], %54 {strides = array<i32>} : memref<8x256xf32, #tpu.memory_space<vmem>>, vector<1x256xf32>,
    %c5_i32 = arith.constant 5 : i32
    %c0_32 = arith.constant 0 : index
    %57 = arith.index_cast %c5_i32 : i32 to index
    %c0_33 = arith.constant 0 : index
    %c0_34 = arith.constant 0 : index
    %58 = vector.load %arg2[%c0_32, %57, %c0_33, %c0_34] : memref<1x8x32x256xf32, #tpu.memory_space<vmem>>, vector<1x1x32x256xf32>
    %59 = vector.shape_cast %58 : vector<1x1x32x256xf32> to vector<32x256xf32>
    %cst_35 = arith.constant dense<0.000000e+00> : vector<16x256xf32>
    %60 = tpu.matmul %0, %59, %cst_35 {dimension_numbers = #tpu.dot_dimension_numbers<[1], [0], [0], [1], [0, 0, 1, 1], [], []>} : vector<16x32xf32>, vector<32x256xf32>, vector<16x256xf32> -> vector<16x256xf32>
    %61 = math.tanh %60 : vector<16x256xf32>
    %62 = vector.broadcast %1 : vector<16x1xf32> to vector<16x256xf32>
    %63 = arith.mulf %61, %62 : vector<16x256xf32>
    %cst_36 = arith.constant dense<0.000000e+00> : vector<256xf32>
    %64 = vector.multi_reduction <add>, %63, %cst_36 [0] : vector<16x256xf32> to vector<256xf32>
    %65 = vector.shape_cast %64 : vector<256xf32> to vector<1x256xf32>
    %66 = arith.index_cast %c5_i32 : i32 to index
    %c0_37 = arith.constant 0 : index
    %67 = vector.load %arg6[%66, %c0_37] : memref<8x256xf32, #tpu.memory_space<vmem>>, vector<1x256xf32>
    tpu.vector_store %arg6[%66, %c0_37], %65 {strides = array<i32>} : memref<8x256xf32, #tpu.memory_space<vmem>>, vector<1x256xf32>,
    %c6_i32 = arith.constant 6 : i32
    %c0_38 = arith.constant 0 : index
    %68 = arith.index_cast %c6_i32 : i32 to index
    %c0_39 = arith.constant 0 : index
    %c0_40 = arith.constant 0 : index
    %69 = vector.load %arg2[%c0_38, %68, %c0_39, %c0_40] : memref<1x8x32x256xf32, #tpu.memory_space<vmem>>, vector<1x1x32x256xf32>
    %70 = vector.shape_cast %69 : vector<1x1x32x256xf32> to vector<32x256xf32>
    %cst_41 = arith.constant dense<0.000000e+00> : vector<16x256xf32>
    %71 = tpu.matmul %0, %70, %cst_41 {dimension_numbers = #tpu.dot_dimension_numbers<[1], [0], [0], [1], [0, 0, 1, 1], [], []>} : vector<16x32xf32>, vector<32x256xf32>, vector<16x256xf32> -> vector<16x256xf32>
    %72 = math.tanh %71 : vector<16x256xf32>
    %73 = vector.broadcast %1 : vector<16x1xf32> to vector<16x256xf32>
    %74 = arith.mulf %72, %73 : vector<16x256xf32>
    %cst_42 = arith.constant dense<0.000000e+00> : vector<256xf32>
    %75 = vector.multi_reduction <add>, %74, %cst_42 [0] : vector<16x256xf32> to vector<256xf32>
    %76 = vector.shape_cast %75 : vector<256xf32> to vector<1x256xf32>
    %77 = arith.index_cast %c6_i32 : i32 to index
    %c0_43 = arith.constant 0 : index
    %78 = vector.load %arg6[%77, %c0_43] : memref<8x256xf32, #tpu.memory_space<vmem>>, vector<1x256xf32>
    tpu.vector_store %arg6[%77, %c0_43], %76 {strides = array<i32>} : memref<8x256xf32, #tpu.memory_space<vmem>>, vector<1x256xf32>,
    %c7_i32 = arith.constant 7 : i32
    %c0_44 = arith.constant 0 : index
    %79 = arith.index_cast %c7_i32 : i32 to index
    %c0_45 = arith.constant 0 : index
    %c0_46 = arith.constant 0 : index
    %80 = vector.load %arg2[%c0_44, %79, %c0_45, %c0_46] : memref<1x8x32x256xf32, #tpu.memory_space<vmem>>, vector<1x1x32x256xf32>
    %81 = vector.shape_cast %80 : vector<1x1x32x256xf32> to vector<32x256xf32>
    %cst_47 = arith.constant dense<0.000000e+00> : vector<16x256xf32>
    %82 = tpu.matmul %0, %81, %cst_47 {dimension_numbers = #tpu.dot_dimension_numbers<[1], [0], [0], [1], [0, 0, 1, 1], [], []>} : vector<16x32xf32>, vector<32x256xf32>, vector<16x256xf32> -> vector<16x256xf32>
    %83 = math.tanh %82 : vector<16x256xf32>
    %84 = vector.broadcast %1 : vector<16x1xf32> to vector<16x256xf32>
    %85 = arith.mulf %83, %84 : vector<16x256xf32>
    %cst_48 = arith.constant dense<0.000000e+00> : vector<256xf32>
    %86 = vector.multi_reduction <add>, %85, %cst_48 [0] : vector<16x256xf32> to vector<256xf32>
    %87 = vector.shape_cast %86 : vector<256xf32> to vector<1x256xf32>
    %88 = arith.index_cast %c7_i32 : i32 to index
    %c0_49 = arith.constant 0 : index
    %89 = vector.load %arg6[%88, %c0_49] : memref<8x256xf32, #tpu.memory_space<vmem>>, vector<1x256xf32>
    tpu.vector_store %arg6[%88, %c0_49], %87 {strides = array<i32>} : memref<8x256xf32, #tpu.memory_space<vmem>>, vector<1x256xf32>,
    %c8_i32 = arith.constant 8 : i32
    %c0_50 = arith.constant 0 : index
    %c0_51 = arith.constant 0 : index
    %90 = vector.load %arg6[%c0_50, %c0_51] : memref<8x256xf32, #tpu.memory_space<vmem>>, vector<8x256xf32>
    %cst_52 = arith.constant dense<0xFF800000> : vector<256xf32>
    %91 = vector.multi_reduction <maximumf>, %90, %cst_52 [0] : vector<8x256xf32> to vector<256xf32>
    %92 = vector.shape_cast %91 : vector<256xf32> to vector<1x256xf32>
    %93 = vector.broadcast %92 : vector<1x256xf32> to vector<8x256xf32>
    %94 = arith.subf %90, %93 : vector<8x256xf32>
    %95 = math.exp %94 : vector<8x256xf32>
    %cst_53 = arith.constant dense<0.000000e+00> : vector<256xf32>
    %96 = vector.multi_reduction <add>, %95, %cst_53 [0] : vector<8x256xf32> to vector<256xf32>
    %97 = vector.shape_cast %96 : vector<256xf32> to vector<1x256xf32>
    %98 = tpu.reciprocal %97 {approx = true} : vector<1x256xf32> -> vector<1x256xf32>
    %99 = vector.broadcast %98 : vector<1x256xf32> to vector<8x256xf32>
    %100 = arith.mulf %95, %99 : vector<8x256xf32>
    %c0_54 = arith.constant 0 : index
    %c0_55 = arith.constant 0 : index
    %101 = vector.load %arg6[%c0_54, %c0_55] : memref<8x256xf32, #tpu.memory_space<vmem>>, vector<8x256xf32>
    tpu.vector_store %arg6[%c0_54, %c0_55], %100 {strides = array<i32>} : memref<8x256xf32, #tpu.memory_space<vmem>>, vector<8x256xf32>,
    %c0_i32_56 = arith.constant 0 : i32
    %102 = arith.index_cast %c0_i32_56 : i32 to index
    %c0_57 = arith.constant 0 : index
    %103 = vector.load %arg6[%102, %c0_57] : memref<8x256xf32, #tpu.memory_space<vmem>>, vector<1x256xf32>
    %c0_58 = arith.constant 0 : index
    %104 = arith.index_cast %c0_i32_56 : i32 to index
    %c0_59 = arith.constant 0 : index
    %c0_60 = arith.constant 0 : index
    %105 = vector.load %arg2[%c0_58, %104, %c0_59, %c0_60] : memref<1x8x32x256xf32, #tpu.memory_space<vmem>>, vector<1x1x32x256xf32>
    %106 = vector.shape_cast %105 : vector<1x1x32x256xf32> to vector<32x256xf32>
    %107 = vector.broadcast %103 : vector<1x256xf32> to vector<32x256xf32>
    %108 = arith.mulf %107, %106 : vector<32x256xf32>
    %c0_61 = arith.constant 0 : index
    %109 = arith.index_cast %c0_i32_56 : i32 to index
    %c0_62 = arith.constant 0 : index
    %c0_63 = arith.constant 0 : index
    %110 = vector.load %arg5[%c0_61, %109, %c0_62, %c0_63] : memref<1x8x32x256xf32, #tpu.memory_space<vmem>>, vector<1x1x32x256xf32>
    %111 = vector.shape_cast %110 : vector<1x1x32x256xf32> to vector<32x256xf32>
    %112 = vector.shape_cast %108 : vector<32x256xf32> to vector<1x1x32x256xf32>
    tpu.vector_store %arg5[%c0_61, %109, %c0_62, %c0_63], %112 {strides = array<i32>} : memref<1x8x32x256xf32, #tpu.memory_space<vmem>>, vector<1x1x32x256xf32>,
    %c1_i32_64 = arith.constant 1 : i32
    %113 = arith.index_cast %c1_i32_64 : i32 to index
    %c0_65 = arith.constant 0 : index
    %114 = vector.load %arg6[%113, %c0_65] : memref<8x256xf32, #tpu.memory_space<vmem>>, vector<1x256xf32>
    %c0_66 = arith.constant 0 : index
    %115 = arith.index_cast %c1_i32_64 : i32 to index
    %c0_67 = arith.constant 0 : index
    %c0_68 = arith.constant 0 : index
    %116 = vector.load %arg2[%c0_66, %115, %c0_67, %c0_68] : memref<1x8x32x256xf32, #tpu.memory_space<vmem>>, vector<1x1x32x256xf32>
    %117 = vector.shape_cast %116 : vector<1x1x32x256xf32> to vector<32x256xf32>
    %118 = vector.broadcast %114 : vector<1x256xf32> to vector<32x256xf32>
    %119 = arith.mulf %118, %117 : vector<32x256xf32>
    %c0_69 = arith.constant 0 : index
    %120 = arith.index_cast %c1_i32_64 : i32 to index
    %c0_70 = arith.constant 0 : index
    %c0_71 = arith.constant 0 : index
    %121 = vector.load %arg5[%c0_69, %120, %c0_70, %c0_71] : memref<1x8x32x256xf32, #tpu.memory_space<vmem>>, vector<1x1x32x256xf32>
    %122 = vector.shape_cast %121 : vector<1x1x32x256xf32> to vector<32x256xf32>
    %123 = vector.shape_cast %119 : vector<32x256xf32> to vector<1x1x32x256xf32>
    tpu.vector_store %arg5[%c0_69, %120, %c0_70, %c0_71], %123 {strides = array<i32>} : memref<1x8x32x256xf32, #tpu.memory_space<vmem>>, vector<1x1x32x256xf32>,
    %c2_i32_72 = arith.constant 2 : i32
    %124 = arith.index_cast %c2_i32_72 : i32 to index
    %c0_73 = arith.constant 0 : index
    %125 = vector.load %arg6[%124, %c0_73] : memref<8x256xf32, #tpu.memory_space<vmem>>, vector<1x256xf32>
    %c0_74 = arith.constant 0 : index
    %126 = arith.index_cast %c2_i32_72 : i32 to index
    %c0_75 = arith.constant 0 : index
    %c0_76 = arith.constant 0 : index
    %127 = vector.load %arg2[%c0_74, %126, %c0_75, %c0_76] : memref<1x8x32x256xf32, #tpu.memory_space<vmem>>, vector<1x1x32x256xf32>
    %128 = vector.shape_cast %127 : vector<1x1x32x256xf32> to vector<32x256xf32>
    %129 = vector.broadcast %125 : vector<1x256xf32> to vector<32x256xf32>
    %130 = arith.mulf %129, %128 : vector<32x256xf32>
    %c0_77 = arith.constant 0 : index
    %131 = arith.index_cast %c2_i32_72 : i32 to index
    %c0_78 = arith.constant 0 : index
    %c0_79 = arith.constant 0 : index
    %132 = vector.load %arg5[%c0_77, %131, %c0_78, %c0_79] : memref<1x8x32x256xf32, #tpu.memory_space<vmem>>, vector<1x1x32x256xf32>
    %133 = vector.shape_cast %132 : vector<1x1x32x256xf32> to vector<32x256xf32>
    %134 = vector.shape_cast %130 : vector<32x256xf32> to vector<1x1x32x256xf32>
    tpu.vector_store %arg5[%c0_77, %131, %c0_78, %c0_79], %134 {strides = array<i32>} : memref<1x8x32x256xf32, #tpu.memory_space<vmem>>, vector<1x1x32x256xf32>,
    %c3_i32_80 = arith.constant 3 : i32
    %135 = arith.index_cast %c3_i32_80 : i32 to index
    %c0_81 = arith.constant 0 : index
    %136 = vector.load %arg6[%135, %c0_81] : memref<8x256xf32, #tpu.memory_space<vmem>>, vector<1x256xf32>
    %c0_82 = arith.constant 0 : index
    %137 = arith.index_cast %c3_i32_80 : i32 to index
    %c0_83 = arith.constant 0 : index
    %c0_84 = arith.constant 0 : index
    %138 = vector.load %arg2[%c0_82, %137, %c0_83, %c0_84] : memref<1x8x32x256xf32, #tpu.memory_space<vmem>>, vector<1x1x32x256xf32>
    %139 = vector.shape_cast %138 : vector<1x1x32x256xf32> to vector<32x256xf32>
    %140 = vector.broadcast %136 : vector<1x256xf32> to vector<32x256xf32>
    %141 = arith.mulf %140, %139 : vector<32x256xf32>
    %c0_85 = arith.constant 0 : index
    %142 = arith.index_cast %c3_i32_80 : i32 to index
    %c0_86 = arith.constant 0 : index
    %c0_87 = arith.constant 0 : index
    %143 = vector.load %arg5[%c0_85, %142, %c0_86, %c0_87] : memref<1x8x32x256xf32, #tpu.memory_space<vmem>>, vector<1x1x32x256xf32>
    %144 = vector.shape_cast %143 : vector<1x1x32x256xf32> to vector<32x256xf32>
    %145 = vector.shape_cast %141 : vector<32x256xf32> to vector<1x1x32x256xf32>
    tpu.vector_store %arg5[%c0_85, %142, %c0_86, %c0_87], %145 {strides = array<i32>} : memref<1x8x32x256xf32, #tpu.memory_space<vmem>>, vector<1x1x32x256xf32>,
    %c4_i32_88 = arith.constant 4 : i32
    %146 = arith.index_cast %c4_i32_88 : i32 to index
    %c0_89 = arith.constant 0 : index
    %147 = vector.load %arg6[%146, %c0_89] : memref<8x256xf32, #tpu.memory_space<vmem>>, vector<1x256xf32>
    %c0_90 = arith.constant 0 : index
    %148 = arith.index_cast %c4_i32_88 : i32 to index
    %c0_91 = arith.constant 0 : index
    %c0_92 = arith.constant 0 : index
    %149 = vector.load %arg2[%c0_90, %148, %c0_91, %c0_92] : memref<1x8x32x256xf32, #tpu.memory_space<vmem>>, vector<1x1x32x256xf32>
    %150 = vector.shape_cast %149 : vector<1x1x32x256xf32> to vector<32x256xf32>
    %151 = vector.broadcast %147 : vector<1x256xf32> to vector<32x256xf32>
    %152 = arith.mulf %151, %150 : vector<32x256xf32>
    %c0_93 = arith.constant 0 : index
    %153 = arith.index_cast %c4_i32_88 : i32 to index
    %c0_94 = arith.constant 0 : index
    %c0_95 = arith.constant 0 : index
    %154 = vector.load %arg5[%c0_93, %153, %c0_94, %c0_95] : memref<1x8x32x256xf32, #tpu.memory_space<vmem>>, vector<1x1x32x256xf32>
    %155 = vector.shape_cast %154 : vector<1x1x32x256xf32> to vector<32x256xf32>
    %156 = vector.shape_cast %152 : vector<32x256xf32> to vector<1x1x32x256xf32>
    tpu.vector_store %arg5[%c0_93, %153, %c0_94, %c0_95], %156 {strides = array<i32>} : memref<1x8x32x256xf32, #tpu.memory_space<vmem>>, vector<1x1x32x256xf32>,
    %c5_i32_96 = arith.constant 5 : i32
    %157 = arith.index_cast %c5_i32_96 : i32 to index
    %c0_97 = arith.constant 0 : index
    %158 = vector.load %arg6[%157, %c0_97] : memref<8x256xf32, #tpu.memory_space<vmem>>, vector<1x256xf32>
    %c0_98 = arith.constant 0 : index
    %159 = arith.index_cast %c5_i32_96 : i32 to index
    %c0_99 = arith.constant 0 : index
    %c0_100 = arith.constant 0 : index
    %160 = vector.load %arg2[%c0_98, %159, %c0_99, %c0_100] : memref<1x8x32x256xf32, #tpu.memory_space<vmem>>, vector<1x1x32x256xf32>
    %161 = vector.shape_cast %160 : vector<1x1x32x256xf32> to vector<32x256xf32>
    %162 = vector.broadcast %158 : vector<1x256xf32> to vector<32x256xf32>
    %163 = arith.mulf %162, %161 : vector<32x256xf32>
    %c0_101 = arith.constant 0 : index
    %164 = arith.index_cast %c5_i32_96 : i32 to index
    %c0_102 = arith.constant 0 : index
    %c0_103 = arith.constant 0 : index
    %165 = vector.load %arg5[%c0_101, %164, %c0_102, %c0_103] : memref<1x8x32x256xf32, #tpu.memory_space<vmem>>, vector<1x1x32x256xf32>
    %166 = vector.shape_cast %165 : vector<1x1x32x256xf32> to vector<32x256xf32>
    %167 = vector.shape_cast %163 : vector<32x256xf32> to vector<1x1x32x256xf32>
    tpu.vector_store %arg5[%c0_101, %164, %c0_102, %c0_103], %167 {strides = array<i32>} : memref<1x8x32x256xf32, #tpu.memory_space<vmem>>, vector<1x1x32x256xf32>,
    %c6_i32_104 = arith.constant 6 : i32
    %168 = arith.index_cast %c6_i32_104 : i32 to index
    %c0_105 = arith.constant 0 : index
    %169 = vector.load %arg6[%168, %c0_105] : memref<8x256xf32, #tpu.memory_space<vmem>>, vector<1x256xf32>
    %c0_106 = arith.constant 0 : index
    %170 = arith.index_cast %c6_i32_104 : i32 to index
    %c0_107 = arith.constant 0 : index
    %c0_108 = arith.constant 0 : index
    %171 = vector.load %arg2[%c0_106, %170, %c0_107, %c0_108] : memref<1x8x32x256xf32, #tpu.memory_space<vmem>>, vector<1x1x32x256xf32>
    %172 = vector.shape_cast %171 : vector<1x1x32x256xf32> to vector<32x256xf32>
    %173 = vector.broadcast %169 : vector<1x256xf32> to vector<32x256xf32>
    %174 = arith.mulf %173, %172 : vector<32x256xf32>
    %c0_109 = arith.constant 0 : index
    %175 = arith.index_cast %c6_i32_104 : i32 to index
    %c0_110 = arith.constant 0 : index
    %c0_111 = arith.constant 0 : index
    %176 = vector.load %arg5[%c0_109, %175, %c0_110, %c0_111] : memref<1x8x32x256xf32, #tpu.memory_space<vmem>>, vector<1x1x32x256xf32>
    %177 = vector.shape_cast %176 : vector<1x1x32x256xf32> to vector<32x256xf32>
    %178 = vector.shape_cast %174 : vector<32x256xf32> to vector<1x1x32x256xf32>
    tpu.vector_store %arg5[%c0_109, %175, %c0_110, %c0_111], %178 {strides = array<i32>} : memref<1x8x32x256xf32, #tpu.memory_space<vmem>>, vector<1x1x32x256xf32>,
    %c7_i32_112 = arith.constant 7 : i32
    %179 = arith.index_cast %c7_i32_112 : i32 to index
    %c0_113 = arith.constant 0 : index
    %180 = vector.load %arg6[%179, %c0_113] : memref<8x256xf32, #tpu.memory_space<vmem>>, vector<1x256xf32>
    %c0_114 = arith.constant 0 : index
    %181 = arith.index_cast %c7_i32_112 : i32 to index
    %c0_115 = arith.constant 0 : index
    %c0_116 = arith.constant 0 : index
    %182 = vector.load %arg2[%c0_114, %181, %c0_115, %c0_116] : memref<1x8x32x256xf32, #tpu.memory_space<vmem>>, vector<1x1x32x256xf32>
    %183 = vector.shape_cast %182 : vector<1x1x32x256xf32> to vector<32x256xf32>
    %184 = vector.broadcast %180 : vector<1x256xf32> to vector<32x256xf32>
    %185 = arith.mulf %184, %183 : vector<32x256xf32>
    %c0_117 = arith.constant 0 : index
    %186 = arith.index_cast %c7_i32_112 : i32 to index
    %c0_118 = arith.constant 0 : index
    %c0_119 = arith.constant 0 : index
    %187 = vector.load %arg5[%c0_117, %186, %c0_118, %c0_119] : memref<1x8x32x256xf32, #tpu.memory_space<vmem>>, vector<1x1x32x256xf32>
    %188 = vector.shape_cast %187 : vector<1x1x32x256xf32> to vector<32x256xf32>
    %189 = vector.shape_cast %185 : vector<32x256xf32> to vector<1x1x32x256xf32>
    tpu.vector_store %arg5[%c0_117, %186, %c0_118, %c0_119], %189 {strides = array<i32>} : memref<1x8x32x256xf32, #tpu.memory_space<vmem>>, vector<1x1x32x256xf32>,
    %c8_i32_120 = arith.constant 8 : i32
    return
  }
  func.func @transform_0(%arg0: i32, %arg1: i32) -> (i32, i32, i32, i32) {
    %c0_i32 = arith.constant 0 : i32
    %c0_i32_0 = arith.constant 0 : i32
    %c0_i32_1 = arith.constant 0 : i32
    return %arg0, %c0_i32, %c0_i32_0, %arg1 : i32, i32, i32, i32
  }
  func.func @transform_1(%arg0: i32, %arg1: i32) -> (i32, i32) {
    %c0_i32 = arith.constant 0 : i32
    %c0_i32_0 = arith.constant 0 : i32
    %c0_i32_1 = arith.constant 0 : i32
    return %c0_i32, %c0_i32_0 : i32, i32
  }
  func.func @transform_2(%arg0: i32, %arg1: i32) -> (i32, i32) {
    %c0_i32 = arith.constant 0 : i32
    %c0_i32_0 = arith.constant 0 : i32
    %c0_i32_1 = arith.constant 0 : i32
    return %c0_i32, %c0_i32_0 : i32, i32
  }
  func.func @transform_3(%arg0: i32, %arg1: i32) -> (i32, i32, i32, i32) {
    %c0_i32 = arith.constant 0 : i32
    %c0_i32_0 = arith.constant 0 : i32
    %c0_i32_1 = arith.constant 0 : i32
    return %arg0, %c0_i32, %c0_i32_0, %arg1 : i32, i32, i32, i32
  }
}

</mosaic_0001>

<llo_original>
// kernel: tpu_custom_call.1
$region0: #{tpu_custom_call.1}
  #allocation0 [shape = 'u32[]', space=smem, size = 0x4, offset = 0x4, fixed_abs, tag = 'smem constant byte address 0x4 - core index']
  #allocation1 [shape = 'u32[144,128]{1,0:T(1,128)}', space=vmem, size = 0x12000, scoped, tag = 'internal scratch']
  #allocation2 [shape = 'f32[8,256]{1,0:T(8,128)}', space=vmem, size = 0x2000, scoped, tag = 'scratch operand']
  %s0 = inlined_call_operand.hbm [shape: f32[2,8,32,256], index: 0, kind: input, shape index: {}]
  %s1 = inlined_call_operand.vmem [shape: f32[16,32], index: 1, kind: input, shape index: {}]
  %s2 = inlined_call_operand.vmem [shape: f32[16,1], index: 2, kind: input, shape index: {}]
  %s3 = inlined_call_operand.hbm [shape: f32[2,8,32,256], index: 3, kind: output, shape index: {}]
  %s4 = sld [smem:[#allocation0]]
  $region49: #{tpu_custom_call.1} parent=0
    _
  %s6 = ssub.s32 1, %s4
  %s7 = scalar_select 0, %s6, %s4
  $region1: #{tpu_custom_call.1} parent=0
    #allocation3 [shape = 'u8[524288]{0}', space=vmem, size = 0x80000, scoped, tag = 'input window, operand 0']
    #allocation4 [shape = 's32[2]{0}', space=sflag, size = 0x8, scoped, tag = 'scoped memory for tpu_custom_call.1']
    #allocation5 [shape = 's32[2]{0}', space=sflag, size = 0x8, scoped, tag = 'scoped memory for tpu_custom_call.1']
    #allocation6 [shape = 'u8[524288]{0}', space=vmem, size = 0x80000, scoped, tag = 'output window, operand 0']
    %8 = vsyncpa [#allocation4], 0
    %s9 = scalar_lea.sflag [#allocation4], 1
    %10 = vsyncpa %s9, 0
    %11 = vsyncpa [#allocation5], 0
    %s12 = scalar_lea.sflag [#allocation5], 1
    %13 = vsyncpa %s12, 0
    loop: start=0, step=1, limit=4
    $region2: #{tpu_custom_call.1} parent=1 // loop_pre_header
      _
    $region3: #{tpu_custom_call.1} parent=1 // loop_header
      %s15 = sphi 0, %s19
      %p16 = scmp.ge.s32.totalorder %s15, 4
      %s22 = sphi 0, %s34
      %s23 = sphi 0, %s30
      %s24 = sphi 0, %s22
      %s25 = sphi 0, %s23
      %s26 = sphi 0, %s24
      %s27 = sphi 0, %s25
      %s39 = sphi 0, %s41
      %s42 = sphi 0, %s39
      %s43 = sphi 0, %s42
      %s59 = sphi 0, %s43
      %s63 = sphi 0, %s63
      %s65 = sphi 0, %s63
      %s66 = sphi 0, %s65
      %s80 = sphi 0, %s66
      %s84 = sphi 0, %s84
      %s86 = sphi 0, %s84
      %s87 = sphi 0, %s86
      %s101 = sphi 0, %s87
      %s109 = sphi 0, %s111
      %s112 = sphi 0, %s109
      %s113 = sphi 0, %s112
      %s129 = sphi 0, %s113
    $region4: #{tpu_custom_call.1} parent=1 // loop_header_branch
      %18 = sbr.rel (%p16) target = $region8
    $region5: #{tpu_custom_call.1} parent=1 // loop_body
      %s20 = ssub.s32 %s15, 1
      %s21 = ssub.s32 %s15, 2
      %s28 = sadd.s32 1, %s23
      %p29 = scmp.ge.s32.totalorder %s28, 1
      %s30 = scalar_select %p29, 0, %s28
      %s31 = sadd.s32 1, %s22
      %s32 = scalar_select %p29, %s31, %s22
      %p33 = scmp.ge.s32.totalorder %s32, 2
      %s34 = scalar_select %p33, 0, %s32
      %s35 = ssub.s32 %s22, %s34
      %s36 = ssub.s32 %s23, %s30
      %s37 = sor.u32 %s35, %s36
      %p38 = scmp.eq.s32.totalorder %s37, 0
      %s40 = sadd.s32 %s39, 1
      %s41 = scalar_select %p38, %s39, %s40
      %p44 = pneg %p38
      %p45 = scmp.eq.s32.totalorder %s15, 1
      %p46 = por %p44, %p45
      %p47 = scmp.ne.s32.totalorder %s39, %s42
      %p48 = scmp.eq.s32.totalorder %s15, 0
      %p49 = por %p47, %p48
      %p50 = scmp.ne.s32.totalorder %s39, %s42
      %p51 = scmp.eq.s32.totalorder %s20, 1
      %p52 = por %p50, %p51
      %p53 = scmp.ne.s32.totalorder %s42, %s43
      %p54 = scmp.eq.s32.totalorder %s20, 0
      %p55 = por %p53, %p54
      %p56 = scmp.ne.s32.totalorder %s42, %s43
      %p57 = scmp.eq.s32.totalorder %s21, 1
      %p58 = por %p56, %p57
      %p60 = scmp.ne.s32.totalorder %s43, %s59
      %p61 = scmp.eq.s32.totalorder %s21, 0
      %p62 = por %p60, %p61
      %s64 = sadd.s32 %s63, 1
      %p67 = scmp.eq.s32.totalorder %s15, 1
      %p68 = scmp.ne.s32.totalorder %s63, %s65
      %p69 = scmp.eq.s32.totalorder %s15, 0
      %p70 = por %p68, %p69
      %p71 = scmp.ne.s32.totalorder %s63, %s65
      %p72 = scmp.eq.s32.totalorder %s20, 1
      %p73 = por %p71, %p72
      %p74 = scmp.ne.s32.totalorder %s65, %s66
      %p75 = scmp.eq.s32.totalorder %s20, 0
      %p76 = por %p74, %p75
      %p77 = scmp.ne.s32.totalorder %s65, %s66
      %p78 = scmp.eq.s32.totalorder %s21, 1
      %p79 = por %p77, %p78
      %p81 = scmp.ne.s32.totalorder %s66, %s80
      %p82 = scmp.eq.s32.totalorder %s21, 0
      %p83 = por %p81, %p82
      %s85 = sadd.s32 %s84, 1
      %p88 = scmp.eq.s32.totalorder %s15, 1
      %p89 = scmp.ne.s32.totalorder %s84, %s86
      %p90 = scmp.eq.s32.totalorder %s15, 0
      %p91 = por %p89, %p90
      %p92 = scmp.ne.s32.totalorder %s84, %s86
      %p93 = scmp.eq.s32.totalorder %s20, 1
      %p94 = por %p92, %p93
      %p95 = scmp.ne.s32.totalorder %s86, %s87
      %p96 = scmp.eq.s32.totalorder %s20, 0
      %p97 = por %p95, %p96
      %p98 = scmp.ne.s32.totalorder %s86, %s87
      %p99 = scmp.eq.s32.totalorder %s21, 1
      %p100 = por %p98, %p99
      %p102 = scmp.ne.s32.totalorder %s87, %s101
      %p103 = scmp.eq.s32.totalorder %s21, 0
      %p104 = por %p102, %p103
      %s105 = ssub.s32 %s22, %s34
      %s106 = ssub.s32 %s23, %s30
      %s107 = sor.u32 %s105, %s106
      %p108 = scmp.eq.s32.totalorder %s107, 0
      %s110 = sadd.s32 %s109, 1
      %s111 = scalar_select %p108, %s109, %s110
      %p114 = pneg %p108
      %p115 = scmp.eq.s32.totalorder %s15, 1
      %p116 = por %p114, %p115
      %p117 = scmp.ne.s32.totalorder %s109, %s112
      %p118 = scmp.eq.s32.totalorder %s15, 0
      %p119 = por %p117, %p118
      %p120 = scmp.ne.s32.totalorder %s109, %s112
      %p121 = scmp.eq.s32.totalorder %s20, 1
      %p122 = por %p120, %p121
      %p123 = scmp.ne.s32.totalorder %s112, %s113
      %p124 = scmp.eq.s32.totalorder %s20, 0
      %p125 = por %p123, %p124
      %p126 = scmp.ne.s32.totalorder %s112, %s113
      %p127 = scmp.eq.s32.totalorder %s21, 1
      %p128 = por %p126, %p127
      %p130 = scmp.ne.s32.totalorder %s113, %s129
      %p131 = scmp.eq.s32.totalorder %s21, 0
      %p132 = por %p130, %p131
      %p133 = scmp.le.s32.totalorder 1, %s15
      %p134 = scmp.lt.s32.totalorder %s15, 3
      %p135 = pnand %p133, %p134
      %p136 = pneg %p135
      // Predicated region
      $region9: #{tpu_custom_call.1} parent=5 // pred_check
        _
      $region10: #{tpu_custom_call.1} parent=5 // pred_check_branch
        %138 = sbr.rel (%p135) target = $region12
      $region11: #{tpu_custom_call.1} parent=5 // pred_region
        %s139 = ssub.s32 %s15, 1
        // Predicated region
        $region13: #{tpu_custom_call.1} parent=11 // pred_check
          %p140 = pneg %p76
        $region14: #{tpu_custom_call.1} parent=11 // pred_check_branch
          %142 = sbr.rel (%p140) target = $region16
        $region15: #{tpu_custom_call.1} parent=11 // pred_region
          _
        $region16: #{tpu_custom_call.1} parent=11 // pred_fallthru
          _
        // Predicated region
        $region17: #{tpu_custom_call.1} parent=11 // pred_check
          %p143 = pneg %p97
        $region18: #{tpu_custom_call.1} parent=11 // pred_check_branch
          %145 = sbr.rel (%p143) target = $region20
        $region19: #{tpu_custom_call.1} parent=11 // pred_region
          _
        $region20: #{tpu_custom_call.1} parent=11 // pred_fallthru
          _
      $region12: #{tpu_custom_call.1} parent=5 // pred_fallthru
        _
      %p146 = scmp.lt.s32.totalorder %s15, 2
      // Predicated region
      $region21: #{tpu_custom_call.1} parent=5 // pred_check
        %p147 = pneg %p146
      $region22: #{tpu_custom_call.1} parent=5 // pred_check_branch
        %149 = sbr.rel (%p147) target = $region24
      $region23: #{tpu_custom_call.1} parent=5 // pred_region
        // Predicated region
        $region25: #{tpu_custom_call.1} parent=23 // pred_check
          %p150 = pneg %p49
        $region26: #{tpu_custom_call.1} parent=23 // pred_check_branch
          %152 = sbr.rel (%p150) target = $region28
        $region27: #{tpu_custom_call.1} parent=23 // pred_region
          %s153 = sand.u32 %s39, 1
          %s154 = scalar_lea.sflag [#allocation4], %s153
          %s155 = sand.u32 %s39, 1
          %s156 = smul.addr %s155, 512
          %s157 = scalar_lea.vmem [#allocation3], %s156
          %s158 = smul.u32 2, %s23
          %s160 = ssub.s32 8192, 8192
          %161 = vsyncadd %s154, %s160
          %s162 = smul.addr %s22, 64
          %s163 = sadd.s32 %s158, %s162
          %s164 = smul.addr %s163, 128
          %s165 = scalar_lea.hbm %s0, %s164
          %s166 = sshll.u32 %s157, 4
          %s167 = int_to_ptr.vmem [resolvable:$true] %s166
          %172 = dma.hbm_to_vmem [thread:$0]  %s165, 8192, %s167, %s154, 256, 256, 16
        $region28: #{tpu_custom_call.1} parent=23 // pred_fallthru
          _
      $region24: #{tpu_custom_call.1} parent=5 // pred_fallthru
        _
      %p173 = scmp.le.s32.totalorder 1, %s15
      %p174 = scmp.lt.s32.totalorder %s15, 3
      %p175 = pnand %p173, %p174
      %p176 = pneg %p175
      // Predicated region
      $region29: #{tpu_custom_call.1} parent=5 // pred_check
        _
      $region30: #{tpu_custom_call.1} parent=5 // pred_check_branch
        %178 = sbr.rel (%p175) target = $region32
      $region31: #{tpu_custom_call.1} parent=5 // pred_region
        %s179 = ssub.s32 %s15, 1
        %s180 = sand.u32 %s42, 1
        %s181 = scalar_lea.sflag [#allocation4], %s180
        %s182 = sand.u32 %s42, 1
        %s183 = smul.addr %s182, 512
        %s184 = scalar_lea.vmem [#allocation3], %s183
        // Predicated region
        $region33: #{tpu_custom_call.1} parent=31 // pred_check
          %p185 = pneg %p55
        $region34: #{tpu_custom_call.1} parent=31 // pred_check_branch
          %187 = sbr.rel (%p185) target = $region36
        $region35: #{tpu_custom_call.1} parent=31 // pred_region
          %188 = dma.done %s181, 8192
        $region36: #{tpu_custom_call.1} parent=31 // pred_fallthru
          _
        %s189 = sand.u32 %s42, 1
        %s190 = scalar_lea.sflag [#allocation4], %s189
        %s191 = sand.u32 %s42, 1
        %s192 = smul.addr %s191, 512
        %s193 = scalar_lea.vmem [#allocation3], %s192
        %p194 = pneg %p55
        %p195 = pneg %p52
        %p196 = pneg %p76
        %p197 = pneg %p73
        %p198 = pneg %p97
        %p199 = pneg %p94
        %p200 = pneg %p125
        %p201 = pneg %p122
        %s202 = sand.u32 %s112, 1
        %s203 = scalar_lea.sflag [#allocation5], %s202
        %s204 = sand.u32 %s112, 1
        %s205 = smul.addr %s204, 512
        %s206 = scalar_lea.vmem [#allocation6], %s205
        %s207 = smul.u32 2, %s25
        %s208 = smul.u32 2, %s25
        %v209 = vld [vmem:[%s1] sm:$0xff]
        %v210 = vld [vmem:[%s1 + $0x8] sm:$0xff]
        %v211 = vld [vmem:[%s2] sm:$0xff]
        %v212 = vld [vmem:[%s2 + $0x8] sm:$0xff]
        %v213 = vld [vmem:[%s184] sm:$0xff]
        %v214 = vld [vmem:[%s184 + $0x8] sm:$0xff]
        %v215 = vld [vmem:[%s184 + $0x10] sm:$0xff]
        %v216 = vld [vmem:[%s184 + $0x18] sm:$0xff]
        %v217 = vld [vmem:[%s184 + $0x20] sm:$0xff]
        %v218 = vld [vmem:[%s184 + $0x28] sm:$0xff]
        %v219 = vld [vmem:[%s184 + $0x30] sm:$0xff]
        %v220 = vld [vmem:[%s184 + $0x38] sm:$0xff]
        %vm221 = vcmask 261120
        %v223 = vsel %vm221, %v209, 0
        %v226 = vsel %vm221, %v210, 0
        %228 = vmatprep.subr.mxu0 %v214
        %229 = vmatpush1.msra.mxu0 %v213
        %230 = vmatprep.subr.mxu0 %v216
        %231 = vmatpush1.msra.mxu0 %v215
        %232 = vmatprep.subr.mxu0 %v218
        %233 = vmatpush1.msra.mxu0 %v217
        %234 = vmatprep.subr.mxu0 %v220
        %235 = vmatpush1.msra.mxu0 %v219
        %236 = vmatprep.subr.mxu0 0.0
        %237 = vmatpush1.msra.mxu0 0.0
        %238 = vmatprep.subr.mxu0 0.0
        %239 = vmatpush1.msra.mxu0 0.0
        %240 = vmatprep.subr.mxu0 0.0
        %241 = vmatpush1.msra.mxu0 0.0
        %242 = vmatprep.subr.mxu0 0.0
        %243 = vmatpush1.msra.mxu0 0.0
        %244 = vmatprep.subr.mxu0 0.0
        %245 = vmatpush1.msra.mxu0 0.0
        %246 = vmatprep.subr.mxu0 0.0
        %247 = vmatpush1.msra.mxu0 0.0
        %248 = vmatprep.subr.mxu0 0.0
        %249 = vmatpush1.msra.mxu0 0.0
        %250 = vmatprep.subr.mxu0 0.0
        %251 = vmatpush1.msra.mxu0 0.0
        %252 = vmatprep.subr.mxu0 0.0
        %253 = vmatpush1.msra.mxu0 0.0
        %254 = vmatprep.subr.mxu0 0.0
        %255 = vmatpush1.msra.mxu0 0.0
        %256 = vmatprep.subr.mxu0 0.0
        %257 = vmatpush1.msra.mxu0 0.0
        %258 = vmatprep.subr.mxu0 0.0
        %259 = vmatpush1.msra.mxu0 0.0
        %260 = vmatprep.subr.mxu0 0.0
        %261 = vmatpush1.msra.mxu0 0.0
        %262 = vmatprep.subr.mxu0 0.0
        %263 = vmatpush1.msra.mxu0 0.0
        %264 = vmatprep.subr.mxu0 0.0
        %265 = vmatpush1.msra.mxu0 0.0
        %266 = vmatprep.subr.mxu0 0.0
        %267 = vmatpush1.msra.mxu0 0.0
        %268 = vmatprep.subr.mxu0 0.0
        %269 = vmatpush1.msra.mxu0 0.0
        %270 = vmatprep.subr.mxu0 0.0
        %271 = vmatpush1.msra.mxu0 0.0
        %272 = vmatprep.subr.mxu0 0.0
        %273 = vmatpush1.msra.mxu0 0.0
        %274 = vmatprep.subr.mxu0 0.0
        %275 = vmatpush1.msra.mxu0 0.0
        %276 = vmatprep.subr.mxu0 0.0
        %277 = vmatpush1.msra.mxu0 0.0
        %278 = vmatprep.subr.mxu0 0.0
        %279 = vmatpush1.msra.mxu0 0.0
        %280 = vmatprep.subr.mxu0 0.0
        %281 = vmatpush1.msra.mxu0 0.0
        %282 = vmatprep.subr.mxu0 0.0
        %283 = vmatpush1.msra.mxu0 0.0
        %284 = vmatprep.subr.mxu0 0.0
        %285 = vmatpush1.msra.mxu0 0.0
        %286 = vmatprep.subr.mxu0 0.0
        %287 = vmatpush1.msra.mxu0 0.0
        %288 = vmatprep.subr.mxu0 0.0
        %289 = vmatpush1.msra.mxu0 0.0
        %290 = vmatprep.subr.mxu0 0.0
        %291 = vmatpush1.msra.mxu0 0.0
        %292 = vmatprep.mubr.f32.mxu0 0.0
        %293 = vmatmul.mubr.f32.gmra.mrb[0].mxu0 %v223
        %v294 = vpop.f32.mrb[0].mxu0
        %v295 = vadd.f32 0.0, %v294
        %v296 = vpop.f32.mrb[0].mxu0
        %v297 = vadd.f32 0.0, %v296
        %298 = vmatprep.mubr.f32.mxu0 0.0
        %299 = vmatmul.mubr.f32.gmra.mrb[0].mxu0 %v226
        %v300 = vpop.f32.mrb[0].mxu0
        %v301 = vadd.f32 0.0, %v300
        %v302 = vpop.f32.mrb[0].mxu0
        %v303 = vadd.f32 0.0, %v302
        %304 = vdwg.mxu0
        %v305 = vtanh.pop %v295
        %v306 = vtanh.pop %v297
        %v307 = vtanh.pop %v301
        %v308 = vtanh.pop %v303
        %310 = vset.pattern.permute.xlu0 0
        %311 = vperm.xlu0 %310, %v211
        %v312 = vpop.permute.xlu0 %311
        %315 = vset.pattern.permute.xlu0 0
        %316 = vperm.xlu0 %315, %v212
        %v317 = vpop.permute.xlu0 %316
        %v319 = vmul.f32 %v305, %v312
        %v320 = vmul.f32 %v306, %v312
        %v321 = vmul.f32 %v307, %v317
        %v322 = vmul.f32 %v308, %v317
        %v323 = vadd.f32 %v319, %v321
        %v324 = vrot.slane %v323, 4
        %v325 = vadd.f32 %v323, %v324
        %v326 = vrot.slane %v325, 2
        %v327 = vadd.f32 %v325, %v326
        %v328 = vrot.slane %v327, 1
        %v329 = vadd.f32 %v327, %v328
        %v330 = vadd.f32 %v320, %v322
        %v331 = vrot.slane %v330, 4
        %v332 = vadd.f32 %v330, %v331
        %v333 = vrot.slane %v332, 2
        %v334 = vadd.f32 %v332, %v333
        %v335 = vrot.slane %v334, 1
        %v336 = vadd.f32 %v334, %v335
        %v339 = vcombine.low %v329, %v336
        %v341 = vunpack.c.l.s4 1966171168
        %v342 = vunpack.c.0.s8 %v341
        %v343 = vlaneseq
        %v344 = vshrl.u32 %v343, 7
        %v345 = vsub.s32 %v342, %v344
        %v346 = vrot.slane %v339, %v345
        %v348 = vunpack.c.l.s4 1966171168
        %v349 = vunpack.c.0.s8 %v348
        %v350 = vlaneseq
        %v351 = vshrl.u32 %v350, 7
        %v352 = vsub.s32 %v349, %v351
        %v353 = vrot.slane %v346, %v352
        %v355 = vlaneseq
        %vm356 = vcmp.ge.s32.totalorder %v355, 0
        %vm357 = vcmp.lt.s32.totalorder %v355, 256
        %vm358 = vmand %vm356, %vm357
        %359 = vst.msk [vmem:[#allocation2] ss:$8 sm:$0x3] %vm358, %v353
        %360 = vst.msk [vmem:[#allocation2] ss:$8 sm:$0x0] %vm358, %v353
        %s361 = scalar_lea.vmem %s184, 64 [#allocation3]
        %v362 = vld [vmem:[%s361] sm:$0xff]
        %v363 = vld [vmem:[%s361 + $0x8] sm:$0xff]
        %v364 = vld [vmem:[%s361 + $0x10] sm:$0xff]
        %v365 = vld [vmem:[%s361 + $0x18] sm:$0xff]
        %v366 = vld [vmem:[%s361 + $0x20] sm:$0xff]
        %v367 = vld [vmem:[%s361 + $0x28] sm:$0xff]
        %v368 = vld [vmem:[%s361 + $0x30] sm:$0xff]
        %v369 = vld [vmem:[%s361 + $0x38] sm:$0xff]
        %370 = vmatprep.subr.mxu0 %v363
        %371 = vmatpush1.msra.mxu0 %v362
        %372 = vmatprep.subr.mxu0 %v365
        %373 = vmatpush1.msra.mxu0 %v364
        %374 = vmatprep.subr.mxu0 %v367
        %375 = vmatpush1.msra.mxu0 %v366
        %376 = vmatprep.subr.mxu0 %v369
        %377 = vmatpush1.msra.mxu0 %v368
        %378 = vmatprep.subr.mxu0 0.0
        %379 = vmatpush1.msra.mxu0 0.0
        %380 = vmatprep.subr.mxu0 0.0
        %381 = vmatpush1.msra.mxu0 0.0
        %382 = vmatprep.subr.mxu0 0.0
        %383 = vmatpush1.msra.mxu0 0.0
        %384 = vmatprep.subr.mxu0 0.0
        %385 = vmatpush1.msra.mxu0 0.0
        %386 = vmatprep.subr.mxu0 0.0
        %387 = vmatpush1.msra.mxu0 0.0
        %388 = vmatprep.subr.mxu0 0.0
        %389 = vmatpush1.msra.mxu0 0.0
        %390 = vmatprep.subr.mxu0 0.0
        %391 = vmatpush1.msra.mxu0 0.0
        %392 = vmatprep.subr.mxu0 0.0
        %393 = vmatpush1.msra.mxu0 0.0
        %394 = vmatprep.subr.mxu0 0.0
        %395 = vmatpush1.msra.mxu0 0.0
        %396 = vmatprep.subr.mxu0 0.0
        %397 = vmatpush1.msra.mxu0 0.0
        %398 = vmatprep.subr.mxu0 0.0
        %399 = vmatpush1.msra.mxu0 0.0
        %400 = vmatprep.subr.mxu0 0.0
        %401 = vmatpush1.msra.mxu0 0.0
        %402 = vmatprep.subr.mxu0 0.0
        %403 = vmatpush1.msra.mxu0 0.0
        %404 = vmatprep.subr.mxu0 0.0
        %405 = vmatpush1.msra.mxu0 0.0
        %406 = vmatprep.subr.mxu0 0.0
        %407 = vmatpush1.msra.mxu0 0.0
        %408 = vmatprep.subr.mxu0 0.0
        %409 = vmatpush1.msra.mxu0 0.0
        %410 = vmatprep.subr.mxu0 0.0
        %411 = vmatpush1.msra.mxu0 0.0
        %412 = vmatprep.subr.mxu0 0.0
        %413 = vmatpush1.msra.mxu0 0.0
        %414 = vmatprep.subr.mxu0 0.0
        %415 = vmatpush1.msra.mxu0 0.0
        %416 = vmatprep.subr.mxu0 0.0
        %417 = vmatpush1.msra.mxu0 0.0
        %418 = vmatprep.subr.mxu0 0.0
        %419 = vmatpush1.msra.mxu0 0.0
        %420 = vmatprep.subr.mxu0 0.0
        %421 = vmatpush1.msra.mxu0 0.0
        %422 = vmatprep.subr.mxu0 0.0
        %423 = vmatpush1.msra.mxu0 0.0
        %424 = vmatprep.subr.mxu0 0.0
        %425 = vmatpush1.msra.mxu0 0.0
        %426 = vmatprep.subr.mxu0 0.0
        %427 = vmatpush1.msra.mxu0 0.0
        %428 = vmatprep.subr.mxu0 0.0
        %429 = vmatpush1.msra.mxu0 0.0
        %430 = vmatprep.subr.mxu0 0.0
        %431 = vmatpush1.msra.mxu0 0.0
        %432 = vmatprep.subr.mxu0 0.0
        %433 = vmatpush1.msra.mxu0 0.0
        %434 = vmatprep.mubr.f32.mxu0 0.0
        %435 = vmatmul.mubr.f32.gmra.mrb[0].mxu0 %v223
        %v436 = vpop.f32.mrb[0].mxu0
        %v437 = vadd.f32 0.0, %v436
        %v438 = vpop.f32.mrb[0].mxu0
        %v439 = vadd.f32 0.0, %v438
        %440 = vmatprep.mubr.f32.mxu0 0.0
        %441 = vmatmul.mubr.f32.gmra.mrb[0].mxu0 %v226
        %v442 = vpop.f32.mrb[0].mxu0
        %v443 = vadd.f32 0.0, %v442
        %v444 = vpop.f32.mrb[0].mxu0
        %v445 = vadd.f32 0.0, %v444
        %446 = vdwg.mxu0
        %v447 = vtanh.pop %v437
        %v448 = vtanh.pop %v439
        %v449 = vtanh.pop %v443
        %v450 = vtanh.pop %v445
        %v451 = vmul.f32 %v447, %v312
        %v452 = vmul.f32 %v448, %v312
        %v453 = vmul.f32 %v449, %v317
        %v454 = vmul.f32 %v450, %v317
        %v455 = vadd.f32 %v451, %v453
        %v456 = vrot.slane %v455, 4
        %v457 = vadd.f32 %v455, %v456
        %v458 = vrot.slane %v457, 2
        %v459 = vadd.f32 %v457, %v458
        %v460 = vrot.slane %v459, 1
        %v461 = vadd.f32 %v459, %v460
        %v462 = vadd.f32 %v452, %v454
        %v463 = vrot.slane %v462, 4
        %v464 = vadd.f32 %v462, %v463
        %v465 = vrot.slane %v464, 2
        %v466 = vadd.f32 %v464, %v465
        %v467 = vrot.slane %v466, 1
        %v468 = vadd.f32 %v466, %v467
        %v471 = vcombine.low %v461, %v468
        %v473 = vunpack.c.l.s4 1966171168
        %v474 = vunpack.c.0.s8 %v473
        %v475 = vlaneseq
        %v476 = vshrl.u32 %v475, 7
        %v477 = vsub.s32 %v474, %v476
        %v478 = vrot.slane %v471, %v477
        %v480 = vunpack.c.l.s4 1966171168
        %v481 = vunpack.c.0.s8 %v480
        %v482 = vlaneseq
        %v483 = vshrl.u32 %v482, 7
        %v484 = vsub.s32 %v481, %v483
        %v485 = vrot.slane %v478, %v484
        %s487 = scalar_lea.vmem [#allocation2], 1
        %488 = vst.msk [vmem:[%s487] ss:$8 sm:$0x3] %vm358, %v485
        %489 = vst.msk [vmem:[%s487] ss:$8 sm:$0x0] %vm358, %v485
        %s490 = scalar_lea.vmem %s184, 128 [#allocation3]
        %v491 = vld [vmem:[%s490] sm:$0xff]
        %v492 = vld [vmem:[%s490 + $0x8] sm:$0xff]
        %v493 = vld [vmem:[%s490 + $0x10] sm:$0xff]
        %v494 = vld [vmem:[%s490 + $0x18] sm:$0xff]
        %v495 = vld [vmem:[%s490 + $0x20] sm:$0xff]
        %v496 = vld [vmem:[%s490 + $0x28] sm:$0xff]
        %v497 = vld [vmem:[%s490 + $0x30] sm:$0xff]
        %v498 = vld [vmem:[%s490 + $0x38] sm:$0xff]
        %499 = vmatprep.subr.mxu0 %v492
        %500 = vmatpush1.msra.mxu0 %v491
        %501 = vmatprep.subr.mxu0 %v494
        %502 = vmatpush1.msra.mxu0 %v493
        %503 = vmatprep.subr.mxu0 %v496
        %504 = vmatpush1.msra.mxu0 %v495
        %505 = vmatprep.subr.mxu0 %v498
        %506 = vmatpush1.msra.mxu0 %v497
        %507 = vmatprep.subr.mxu0 0.0
        %508 = vmatpush1.msra.mxu0 0.0
        %509 = vmatprep.subr.mxu0 0.0
        %510 = vmatpush1.msra.mxu0 0.0
        %511 = vmatprep.subr.mxu0 0.0
        %512 = vmatpush1.msra.mxu0 0.0
        %513 = vmatprep.subr.mxu0 0.0
        %514 = vmatpush1.msra.mxu0 0.0
        %515 = vmatprep.subr.mxu0 0.0
        %516 = vmatpush1.msra.mxu0 0.0
        %517 = vmatprep.subr.mxu0 0.0
        %518 = vmatpush1.msra.mxu0 0.0
        %519 = vmatprep.subr.mxu0 0.0
        %520 = vmatpush1.msra.mxu0 0.0
        %521 = vmatprep.subr.mxu0 0.0
        %522 = vmatpush1.msra.mxu0 0.0
        %523 = vmatprep.subr.mxu0 0.0
        %524 = vmatpush1.msra.mxu0 0.0
        %525 = vmatprep.subr.mxu0 0.0
        %526 = vmatpush1.msra.mxu0 0.0
        %527 = vmatprep.subr.mxu0 0.0
        %528 = vmatpush1.msra.mxu0 0.0
        %529 = vmatprep.subr.mxu0 0.0
        %530 = vmatpush1.msra.mxu0 0.0
        %531 = vmatprep.subr.mxu0 0.0
        %532 = vmatpush1.msra.mxu0 0.0
        %533 = vmatprep.subr.mxu0 0.0
        %534 = vmatpush1.msra.mxu0 0.0
        %535 = vmatprep.subr.mxu0 0.0
        %536 = vmatpush1.msra.mxu0 0.0
        %537 = vmatprep.subr.mxu0 0.0
        %538 = vmatpush1.msra.mxu0 0.0
        %539 = vmatprep.subr.mxu0 0.0
        %540 = vmatpush1.msra.mxu0 0.0
        %541 = vmatprep.subr.mxu0 0.0
        %542 = vmatpush1.msra.mxu0 0.0
        %543 = vmatprep.subr.mxu0 0.0
        %544 = vmatpush1.msra.mxu0 0.0
        %545 = vmatprep.subr.mxu0 0.0
        %546 = vmatpush1.msra.mxu0 0.0
        %547 = vmatprep.subr.mxu0 0.0
        %548 = vmatpush1.msra.mxu0 0.0
        %549 = vmatprep.subr.mxu0 0.0
        %550 = vmatpush1.msra.mxu0 0.0
        %551 = vmatprep.subr.mxu0 0.0
        %552 = vmatpush1.msra.mxu0 0.0
        %553 = vmatprep.subr.mxu0 0.0
        %554 = vmatpush1.msra.mxu0 0.0
        %555 = vmatprep.subr.mxu0 0.0
        %556 = vmatpush1.msra.mxu0 0.0
        %557 = vmatprep.subr.mxu0 0.0
        %558 = vmatpush1.msra.mxu0 0.0
        %559 = vmatprep.subr.mxu0 0.0
        %560 = vmatpush1.msra.mxu0 0.0
        %561 = vmatprep.subr.mxu0 0.0
        %562 = vmatpush1.msra.mxu0 0.0
        %563 = vmatprep.mubr.f32.mxu0 0.0
        %564 = vmatmul.mubr.f32.gmra.mrb[0].mxu0 %v223
        %v565 = vpop.f32.mrb[0].mxu0
        %v566 = vadd.f32 0.0, %v565
        %v567 = vpop.f32.mrb[0].mxu0
        %v568 = vadd.f32 0.0, %v567
        %569 = vmatprep.mubr.f32.mxu0 0.0
        %570 = vmatmul.mubr.f32.gmra.mrb[0].mxu0 %v226
        %v571 = vpop.f32.mrb[0].mxu0
        %v572 = vadd.f32 0.0, %v571
        %v573 = vpop.f32.mrb[0].mxu0
        %v574 = vadd.f32 0.0, %v573
        %575 = vdwg.mxu0
        %v576 = vtanh.pop %v566
        %v577 = vtanh.pop %v568
        %v578 = vtanh.pop %v572
        %v579 = vtanh.pop %v574
        %v580 = vmul.f32 %v576, %v312
        %v581 = vmul.f32 %v577, %v312
        %v582 = vmul.f32 %v578, %v317
        %v583 = vmul.f32 %v579, %v317
        %v584 = vadd.f32 %v580, %v582
        %v585 = vrot.slane %v584, 4
        %v586 = vadd.f32 %v584, %v585
        %v587 = vrot.slane %v586, 2
        %v588 = vadd.f32 %v586, %v587
        %v589 = vrot.slane %v588, 1
        %v590 = vadd.f32 %v588, %v589
        %v591 = vadd.f32 %v581, %v583
        %v592 = vrot.slane %v591, 4
        %v593 = vadd.f32 %v591, %v592
        %v594 = vrot.slane %v593, 2
        %v595 = vadd.f32 %v593, %v594
        %v596 = vrot.slane %v595, 1
        %v597 = vadd.f32 %v595, %v596
        %v600 = vcombine.low %v590, %v597
        %v602 = vunpack.c.l.s4 1966171168
        %v603 = vunpack.c.0.s8 %v602
        %v604 = vlaneseq
        %v605 = vshrl.u32 %v604, 7
        %v606 = vsub.s32 %v603, %v605
        %v607 = vrot.slane %v600, %v606
        %v609 = vunpack.c.l.s4 1966171168
        %v610 = vunpack.c.0.s8 %v609
        %v611 = vlaneseq
        %v612 = vshrl.u32 %v611, 7
        %v613 = vsub.s32 %v610, %v612
        %v614 = vrot.slane %v607, %v613
        %s616 = scalar_lea.vmem [#allocation2], 2
        %617 = vst.msk [vmem:[%s616] ss:$8 sm:$0x3] %vm358, %v614
        %618 = vst.msk [vmem:[%s616] ss:$8 sm:$0x0] %vm358, %v614
        %s619 = scalar_lea.vmem %s184, 192 [#allocation3]
        %v620 = vld [vmem:[%s619] sm:$0xff]
        %v621 = vld [vmem:[%s619 + $0x8] sm:$0xff]
        %v622 = vld [vmem:[%s619 + $0x10] sm:$0xff]
        %v623 = vld [vmem:[%s619 + $0x18] sm:$0xff]
        %v624 = vld [vmem:[%s619 + $0x20] sm:$0xff]
        %v625 = vld [vmem:[%s619 + $0x28] sm:$0xff]
        %v626 = vld [vmem:[%s619 + $0x30] sm:$0xff]
        %v627 = vld [vmem:[%s619 + $0x38] sm:$0xff]
        %628 = vmatprep.subr.mxu0 %v621
        %629 = vmatpush1.msra.mxu0 %v620
        %630 = vmatprep.subr.mxu0 %v623
        %631 = vmatpush1.msra.mxu0 %v622
        %632 = vmatprep.subr.mxu0 %v625
        %633 = vmatpush1.msra.mxu0 %v624
        %634 = vmatprep.subr.mxu0 %v627
        %635 = vmatpush1.msra.mxu0 %v626
        %636 = vmatprep.subr.mxu0 0.0
        %637 = vmatpush1.msra.mxu0 0.0
        %638 = vmatprep.subr.mxu0 0.0
        %639 = vmatpush1.msra.mxu0 0.0
        %640 = vmatprep.subr.mxu0 0.0
        %641 = vmatpush1.msra.mxu0 0.0
        %642 = vmatprep.subr.mxu0 0.0
        %643 = vmatpush1.msra.mxu0 0.0
        %644 = vmatprep.subr.mxu0 0.0
        %645 = vmatpush1.msra.mxu0 0.0
        %646 = vmatprep.subr.mxu0 0.0
        %647 = vmatpush1.msra.mxu0 0.0
        %648 = vmatprep.subr.mxu0 0.0
        %649 = vmatpush1.msra.mxu0 0.0
        %650 = vmatprep.subr.mxu0 0.0
        %651 = vmatpush1.msra.mxu0 0.0
        %652 = vmatprep.subr.mxu0 0.0
        %653 = vmatpush1.msra.mxu0 0.0
        %654 = vmatprep.subr.mxu0 0.0
        %655 = vmatpush1.msra.mxu0 0.0
        %656 = vmatprep.subr.mxu0 0.0
        %657 = vmatpush1.msra.mxu0 0.0
        %658 = vmatprep.subr.mxu0 0.0
        %659 = vmatpush1.msra.mxu0 0.0
        %660 = vmatprep.subr.mxu0 0.0
        %661 = vmatpush1.msra.mxu0 0.0
        %662 = vmatprep.subr.mxu0 0.0
        %663 = vmatpush1.msra.mxu0 0.0
        %664 = vmatprep.subr.mxu0 0.0
        %665 = vmatpush1.msra.mxu0 0.0
        %666 = vmatprep.subr.mxu0 0.0
        %667 = vmatpush1.msra.mxu0 0.0
        %668 = vmatprep.subr.mxu0 0.0
        %669 = vmatpush1.msra.mxu0 0.0
        %670 = vmatprep.subr.mxu0 0.0
        %671 = vmatpush1.msra.mxu0 0.0
        %672 = vmatprep.subr.mxu0 0.0
        %673 = vmatpush1.msra.mxu0 0.0
        %674 = vmatprep.subr.mxu0 0.0
        %675 = vmatpush1.msra.mxu0 0.0
        %676 = vmatprep.subr.mxu0 0.0
        %677 = vmatpush1.msra.mxu0 0.0
        %678 = vmatprep.subr.mxu0 0.0
        %679 = vmatpush1.msra.mxu0 0.0
        %680 = vmatprep.subr.mxu0 0.0
        %681 = vmatpush1.msra.mxu0 0.0
        %682 = vmatprep.subr.mxu0 0.0
        %683 = vmatpush1.msra.mxu0 0.0
        %684 = vmatprep.subr.mxu0 0.0
        %685 = vmatpush1.msra.mxu0 0.0
        %686 = vmatprep.subr.mxu0 0.0
        %687 = vmatpush1.msra.mxu0 0.0
        %688 = vmatprep.subr.mxu0 0.0
        %689 = vmatpush1.msra.mxu0 0.0
        %690 = vmatprep.subr.mxu0 0.0
        %691 = vmatpush1.msra.mxu0 0.0
        %692 = vmatprep.mubr.f32.mxu0 0.0
        %693 = vmatmul.mubr.f32.gmra.mrb[0].mxu0 %v223
        %v694 = vpop.f32.mrb[0].mxu0
        %v695 = vadd.f32 0.0, %v694
        %v696 = vpop.f32.mrb[0].mxu0
        %v697 = vadd.f32 0.0, %v696
        %698 = vmatprep.mubr.f32.mxu0 0.0
        %699 = vmatmul.mubr.f32.gmra.mrb[0].mxu0 %v226
        %v700 = vpop.f32.mrb[0].mxu0
        %v701 = vadd.f32 0.0, %v700
        %v702 = vpop.f32.mrb[0].mxu0
        %v703 = vadd.f32 0.0, %v702
        %704 = vdwg.mxu0
        %v705 = vtanh.pop %v695
        %v706 = vtanh.pop %v697
        %v707 = vtanh.pop %v701
        %v708 = vtanh.pop %v703
        %v709 = vmul.f32 %v705, %v312
        %v710 = vmul.f32 %v706, %v312
        %v711 = vmul.f32 %v707, %v317
        %v712 = vmul.f32 %v708, %v317
        %v713 = vadd.f32 %v709, %v711
        %v714 = vrot.slane %v713, 4
        %v715 = vadd.f32 %v713, %v714
        %v716 = vrot.slane %v715, 2
        %v717 = vadd.f32 %v715, %v716
        %v718 = vrot.slane %v717, 1
        %v719 = vadd.f32 %v717, %v718
        %v720 = vadd.f32 %v710, %v712
        %v721 = vrot.slane %v720, 4
        %v722 = vadd.f32 %v720, %v721
        %v723 = vrot.slane %v722, 2
        %v724 = vadd.f32 %v722, %v723
        %v725 = vrot.slane %v724, 1
        %v726 = vadd.f32 %v724, %v725
        %v729 = vcombine.low %v719, %v726
        %v731 = vunpack.c.l.s4 1966171168
        %v732 = vunpack.c.0.s8 %v731
        %v733 = vlaneseq
        %v734 = vshrl.u32 %v733, 7
        %v735 = vsub.s32 %v732, %v734
        %v736 = vrot.slane %v729, %v735
        %v738 = vunpack.c.l.s4 1966171168
        %v739 = vunpack.c.0.s8 %v738
        %v740 = vlaneseq
        %v741 = vshrl.u32 %v740, 7
        %v742 = vsub.s32 %v739, %v741
        %v743 = vrot.slane %v736, %v742
        %s745 = scalar_lea.vmem [#allocation2], 3
        %746 = vst.msk [vmem:[%s745] ss:$8 sm:$0x3] %vm358, %v743
        %747 = vst.msk [vmem:[%s745] ss:$8 sm:$0x0] %vm358, %v743
        %s748 = scalar_lea.vmem %s184, 256 [#allocation3]
        %v749 = vld [vmem:[%s748] sm:$0xff]
        %v750 = vld [vmem:[%s748 + $0x8] sm:$0xff]
        %v751 = vld [vmem:[%s748 + $0x10] sm:$0xff]
        %v752 = vld [vmem:[%s748 + $0x18] sm:$0xff]
        %v753 = vld [vmem:[%s748 + $0x20] sm:$0xff]
        %v754 = vld [vmem:[%s748 + $0x28] sm:$0xff]
        %v755 = vld [vmem:[%s748 + $0x30] sm:$0xff]
        %v756 = vld [vmem:[%s748 + $0x38] sm:$0xff]
        %757 = vmatprep.subr.mxu0 %v750
        %758 = vmatpush1.msra.mxu0 %v749
        %759 = vmatprep.subr.mxu0 %v752
        %760 = vmatpush1.msra.mxu0 %v751
        %761 = vmatprep.subr.mxu0 %v754
        %762 = vmatpush1.msra.mxu0 %v753
        %763 = vmatprep.subr.mxu0 %v756
        %764 = vmatpush1.msra.mxu0 %v755
        %765 = vmatprep.subr.mxu0 0.0
        %766 = vmatpush1.msra.mxu0 0.0
        %767 = vmatprep.subr.mxu0 0.0
        %768 = vmatpush1.msra.mxu0 0.0
        %769 = vmatprep.subr.mxu0 0.0
        %770 = vmatpush1.msra.mxu0 0.0
        %771 = vmatprep.subr.mxu0 0.0
        %772 = vmatpush1.msra.mxu0 0.0
        %773 = vmatprep.subr.mxu0 0.0
        %774 = vmatpush1.msra.mxu0 0.0
        %775 = vmatprep.subr.mxu0 0.0
        %776 = vmatpush1.msra.mxu0 0.0
        %777 = vmatprep.subr.mxu0 0.0
        %778 = vmatpush1.msra.mxu0 0.0
        %779 = vmatprep.subr.mxu0 0.0
        %780 = vmatpush1.msra.mxu0 0.0
        %781 = vmatprep.subr.mxu0 0.0
        %782 = vmatpush1.msra.mxu0 0.0
        %783 = vmatprep.subr.mxu0 0.0
        %784 = vmatpush1.msra.mxu0 0.0
        %785 = vmatprep.subr.mxu0 0.0
        %786 = vmatpush1.msra.mxu0 0.0
        %787 = vmatprep.subr.mxu0 0.0
        %788 = vmatpush1.msra.mxu0 0.0
        %789 = vmatprep.subr.mxu0 0.0
        %790 = vmatpush1.msra.mxu0 0.0
        %791 = vmatprep.subr.mxu0 0.0
        %792 = vmatpush1.msra.mxu0 0.0
        %793 = vmatprep.subr.mxu0 0.0
        %794 = vmatpush1.msra.mxu0 0.0
        %795 = vmatprep.subr.mxu0 0.0
        %796 = vmatpush1.msra.mxu0 0.0
        %797 = vmatprep.subr.mxu0 0.0
        %798 = vmatpush1.msra.mxu0 0.0
        %799 = vmatprep.subr.mxu0 0.0
        %800 = vmatpush1.msra.mxu0 0.0
        %801 = vmatprep.subr.mxu0 0.0
        %802 = vmatpush1.msra.mxu0 0.0
        %803 = vmatprep.subr.mxu0 0.0
        %804 = vmatpush1.msra.mxu0 0.0
        %805 = vmatprep.subr.mxu0 0.0
        %806 = vmatpush1.msra.mxu0 0.0
        %807 = vmatprep.subr.mxu0 0.0
        %808 = vmatpush1.msra.mxu0 0.0
        %809 = vmatprep.subr.mxu0 0.0
        %810 = vmatpush1.msra.mxu0 0.0
        %811 = vmatprep.subr.mxu0 0.0
        %812 = vmatpush1.msra.mxu0 0.0
        %813 = vmatprep.subr.mxu0 0.0
        %814 = vmatpush1.msra.mxu0 0.0
        %815 = vmatprep.subr.mxu0 0.0
        %816 = vmatpush1.msra.mxu0 0.0
        %817 = vmatprep.subr.mxu0 0.0
        %818 = vmatpush1.msra.mxu0 0.0
        %819 = vmatprep.subr.mxu0 0.0
        %820 = vmatpush1.msra.mxu0 0.0
        %821 = vmatprep.mubr.f32.mxu0 0.0
        %822 = vmatmul.mubr.f32.gmra.mrb[0].mxu0 %v223
        %v823 = vpop.f32.mrb[0].mxu0
        %v824 = vadd.f32 0.0, %v823
        %v825 = vpop.f32.mrb[0].mxu0
        %v826 = vadd.f32 0.0, %v825
        %827 = vmatprep.mubr.f32.mxu0 0.0
        %828 = vmatmul.mubr.f32.gmra.mrb[0].mxu0 %v226
        %v829 = vpop.f32.mrb[0].mxu0
        %v830 = vadd.f32 0.0, %v829
        %v831 = vpop.f32.mrb[0].mxu0
        %v832 = vadd.f32 0.0, %v831
        %833 = vdwg.mxu0
        %v834 = vtanh.pop %v824
        %v835 = vtanh.pop %v826
        %v836 = vtanh.pop %v830
        %v837 = vtanh.pop %v832
        %v838 = vmul.f32 %v834, %v312
        %v839 = vmul.f32 %v835, %v312
        %v840 = vmul.f32 %v836, %v317
        %v841 = vmul.f32 %v837, %v317
        %v842 = vadd.f32 %v838, %v840
        %v843 = vrot.slane %v842, 4
        %v844 = vadd.f32 %v842, %v843
        %v845 = vrot.slane %v844, 2
        %v846 = vadd.f32 %v844, %v845
        %v847 = vrot.slane %v846, 1
        %v848 = vadd.f32 %v846, %v847
        %v849 = vadd.f32 %v839, %v841
        %v850 = vrot.slane %v849, 4
        %v851 = vadd.f32 %v849, %v850
        %v852 = vrot.slane %v851, 2
        %v853 = vadd.f32 %v851, %v852
        %v854 = vrot.slane %v853, 1
        %v855 = vadd.f32 %v853, %v854
        %v858 = vcombine.low %v848, %v855
        %v860 = vunpack.c.l.s4 1966171168
        %v861 = vunpack.c.0.s8 %v860
        %v862 = vlaneseq
        %v863 = vshrl.u32 %v862, 7
        %v864 = vsub.s32 %v861, %v863
        %v865 = vrot.slane %v858, %v864
        %v867 = vunpack.c.l.s4 1966171168
        %v868 = vunpack.c.0.s8 %v867
        %v869 = vlaneseq
        %v870 = vshrl.u32 %v869, 7
        %v871 = vsub.s32 %v868, %v870
        %v872 = vrot.slane %v865, %v871
        %s874 = scalar_lea.vmem [#allocation2], 4
        %875 = vst.msk [vmem:[%s874] ss:$8 sm:$0x3] %vm358, %v872
        %876 = vst.msk [vmem:[%s874] ss:$8 sm:$0x0] %vm358, %v872
        %s877 = scalar_lea.vmem %s184, 320 [#allocation3]
        %v878 = vld [vmem:[%s877] sm:$0xff]
        %v879 = vld [vmem:[%s877 + $0x8] sm:$0xff]
        %v880 = vld [vmem:[%s877 + $0x10] sm:$0xff]
        %v881 = vld [vmem:[%s877 + $0x18] sm:$0xff]
        %v882 = vld [vmem:[%s877 + $0x20] sm:$0xff]
        %v883 = vld [vmem:[%s877 + $0x28] sm:$0xff]
        %v884 = vld [vmem:[%s877 + $0x30] sm:$0xff]
        %v885 = vld [vmem:[%s877 + $0x38] sm:$0xff]
        %886 = vmatprep.subr.mxu0 %v879
        %887 = vmatpush1.msra.mxu0 %v878
        %888 = vmatprep.subr.mxu0 %v881
        %889 = vmatpush1.msra.mxu0 %v880
        %890 = vmatprep.subr.mxu0 %v883
        %891 = vmatpush1.msra.mxu0 %v882
        %892 = vmatprep.subr.mxu0 %v885
        %893 = vmatpush1.msra.mxu0 %v884
        %894 = vmatprep.subr.mxu0 0.0
        %895 = vmatpush1.msra.mxu0 0.0
        %896 = vmatprep.subr.mxu0 0.0
        %897 = vmatpush1.msra.mxu0 0.0
        %898 = vmatprep.subr.mxu0 0.0
        %899 = vmatpush1.msra.mxu0 0.0
        %900 = vmatprep.subr.mxu0 0.0
        %901 = vmatpush1.msra.mxu0 0.0
        %902 = vmatprep.subr.mxu0 0.0
        %903 = vmatpush1.msra.mxu0 0.0
        %904 = vmatprep.subr.mxu0 0.0
        %905 = vmatpush1.msra.mxu0 0.0
        %906 = vmatprep.subr.mxu0 0.0
        %907 = vmatpush1.msra.mxu0 0.0
        %908 = vmatprep.subr.mxu0 0.0
        %909 = vmatpush1.msra.mxu0 0.0
        %910 = vmatprep.subr.mxu0 0.0
        %911 = vmatpush1.msra.mxu0 0.0
        %912 = vmatprep.subr.mxu0 0.0
        %913 = vmatpush1.msra.mxu0 0.0
        %914 = vmatprep.subr.mxu0 0.0
        %915 = vmatpush1.msra.mxu0 0.0
        %916 = vmatprep.subr.mxu0 0.0
        %917 = vmatpush1.msra.mxu0 0.0
        %918 = vmatprep.subr.mxu0 0.0
        %919 = vmatpush1.msra.mxu0 0.0
        %920 = vmatprep.subr.mxu0 0.0
        %921 = vmatpush1.msra.mxu0 0.0
        %922 = vmatprep.subr.mxu0 0.0
        %923 = vmatpush1.msra.mxu0 0.0
        %924 = vmatprep.subr.mxu0 0.0
        %925 = vmatpush1.msra.mxu0 0.0
        %926 = vmatprep.subr.mxu0 0.0
        %927 = vmatpush1.msra.mxu0 0.0
        %928 = vmatprep.subr.mxu0 0.0
        %929 = vmatpush1.msra.mxu0 0.0
        %930 = vmatprep.subr.mxu0 0.0
        %931 = vmatpush1.msra.mxu0 0.0
        %932 = vmatprep.subr.mxu0 0.0
        %933 = vmatpush1.msra.mxu0 0.0
        %934 = vmatprep.subr.mxu0 0.0
        %935 = vmatpush1.msra.mxu0 0.0
        %936 = vmatprep.subr.mxu0 0.0
        %937 = vmatpush1.msra.mxu0 0.0
        %938 = vmatprep.subr.mxu0 0.0
        %939 = vmatpush1.msra.mxu0 0.0
        %940 = vmatprep.subr.mxu0 0.0
        %941 = vmatpush1.msra.mxu0 0.0
        %942 = vmatprep.subr.mxu0 0.0
        %943 = vmatpush1.msra.mxu0 0.0
        %944 = vmatprep.subr.mxu0 0.0
        %945 = vmatpush1.msra.mxu0 0.0
        %946 = vmatprep.subr.mxu0 0.0
        %947 = vmatpush1.msra.mxu0 0.0
        %948 = vmatprep.subr.mxu0 0.0
        %949 = vmatpush1.msra.mxu0 0.0
        %950 = vmatprep.mubr.f32.mxu0 0.0
        %951 = vmatmul.mubr.f32.gmra.mrb[0].mxu0 %v223
        %v952 = vpop.f32.mrb[0].mxu0
        %v953 = vadd.f32 0.0, %v952
        %v954 = vpop.f32.mrb[0].mxu0
        %v955 = vadd.f32 0.0, %v954
        %956 = vmatprep.mubr.f32.mxu0 0.0
        %957 = vmatmul.mubr.f32.gmra.mrb[0].mxu0 %v226
        %v958 = vpop.f32.mrb[0].mxu0
        %v959 = vadd.f32 0.0, %v958
        %v960 = vpop.f32.mrb[0].mxu0
        %v961 = vadd.f32 0.0, %v960
        %962 = vdwg.mxu0
        %v963 = vtanh.pop %v953
        %v964 = vtanh.pop %v955
        %v965 = vtanh.pop %v959
        %v966 = vtanh.pop %v961
        %v967 = vmul.f32 %v963, %v312
        %v968 = vmul.f32 %v964, %v312
        %v969 = vmul.f32 %v965, %v317
        %v970 = vmul.f32 %v966, %v317
        %v971 = vadd.f32 %v967, %v969
        %v972 = vrot.slane %v971, 4
        %v973 = vadd.f32 %v971, %v972
        %v974 = vrot.slane %v973, 2
        %v975 = vadd.f32 %v973, %v974
        %v976 = vrot.slane %v975, 1
        %v977 = vadd.f32 %v975, %v976
        %v978 = vadd.f32 %v968, %v970
        %v979 = vrot.slane %v978, 4
        %v980 = vadd.f32 %v978, %v979
        %v981 = vrot.slane %v980, 2
        %v982 = vadd.f32 %v980, %v981
        %v983 = vrot.slane %v982, 1
        %v984 = vadd.f32 %v982, %v983
        %v987 = vcombine.low %v977, %v984
        %v989 = vunpack.c.l.s4 1966171168
        %v990 = vunpack.c.0.s8 %v989
        %v991 = vlaneseq
        %v992 = vshrl.u32 %v991, 7
        %v993 = vsub.s32 %v990, %v992
        %v994 = vrot.slane %v987, %v993
        %v996 = vunpack.c.l.s4 1966171168
        %v997 = vunpack.c.0.s8 %v996
        %v998 = vlaneseq
        %v999 = vshrl.u32 %v998, 7
        %v1000 = vsub.s32 %v997, %v999
        %v1001 = vrot.slane %v994, %v1000
        %s1003 = scalar_lea.vmem [#allocation2], 5
        %1004 = vst.msk [vmem:[%s1003] ss:$8 sm:$0x3] %vm358, %v1001
        %1005 = vst.msk [vmem:[%s1003] ss:$8 sm:$0x0] %vm358, %v1001
        %s1006 = scalar_lea.vmem %s184, 384 [#allocation3]
        %v1007 = vld [vmem:[%s1006] sm:$0xff]
        %v1008 = vld [vmem:[%s1006 + $0x8] sm:$0xff]
        %v1009 = vld [vmem:[%s1006 + $0x10] sm:$0xff]
        %v1010 = vld [vmem:[%s1006 + $0x18] sm:$0xff]
        %v1011 = vld [vmem:[%s1006 + $0x20] sm:$0xff]
        %v1012 = vld [vmem:[%s1006 + $0x28] sm:$0xff]
        %v1013 = vld [vmem:[%s1006 + $0x30] sm:$0xff]
        %v1014 = vld [vmem:[%s1006 + $0x38] sm:$0xff]
        %1015 = vmatprep.subr.mxu0 %v1008
        %1016 = vmatpush1.msra.mxu0 %v1007
        %1017 = vmatprep.subr.mxu0 %v1010
        %1018 = vmatpush1.msra.mxu0 %v1009
        %1019 = vmatprep.subr.mxu0 %v1012
        %1020 = vmatpush1.msra.mxu0 %v1011
        %1021 = vmatprep.subr.mxu0 %v1014
        %1022 = vmatpush1.msra.mxu0 %v1013
        %1023 = vmatprep.subr.mxu0 0.0
        %1024 = vmatpush1.msra.mxu0 0.0
        %1025 = vmatprep.subr.mxu0 0.0
        %1026 = vmatpush1.msra.mxu0 0.0
        %1027 = vmatprep.subr.mxu0 0.0
        %1028 = vmatpush1.msra.mxu0 0.0
        %1029 = vmatprep.subr.mxu0 0.0
        %1030 = vmatpush1.msra.mxu0 0.0
        %1031 = vmatprep.subr.mxu0 0.0
        %1032 = vmatpush1.msra.mxu0 0.0
        %1033 = vmatprep.subr.mxu0 0.0
        %1034 = vmatpush1.msra.mxu0 0.0
        %1035 = vmatprep.subr.mxu0 0.0
        %1036 = vmatpush1.msra.mxu0 0.0
        %1037 = vmatprep.subr.mxu0 0.0
        %1038 = vmatpush1.msra.mxu0 0.0
        %1039 = vmatprep.subr.mxu0 0.0
        %1040 = vmatpush1.msra.mxu0 0.0
        %1041 = vmatprep.subr.mxu0 0.0
        %1042 = vmatpush1.msra.mxu0 0.0
        %1043 = vmatprep.subr.mxu0 0.0
        %1044 = vmatpush1.msra.mxu0 0.0
        %1045 = vmatprep.subr.mxu0 0.0
        %1046 = vmatpush1.msra.mxu0 0.0
        %1047 = vmatprep.subr.mxu0 0.0
        %1048 = vmatpush1.msra.mxu0 0.0
        %1049 = vmatprep.subr.mxu0 0.0
        %1050 = vmatpush1.msra.mxu0 0.0
        %1051 = vmatprep.subr.mxu0 0.0
        %1052 = vmatpush1.msra.mxu0 0.0
        %1053 = vmatprep.subr.mxu0 0.0
        %1054 = vmatpush1.msra.mxu0 0.0
        %1055 = vmatprep.subr.mxu0 0.0
        %1056 = vmatpush1.msra.mxu0 0.0
        %1057 = vmatprep.subr.mxu0 0.0
        %1058 = vmatpush1.msra.mxu0 0.0
        %1059 = vmatprep.subr.mxu0 0.0
        %1060 = vmatpush1.msra.mxu0 0.0
        %1061 = vmatprep.subr.mxu0 0.0
        %1062 = vmatpush1.msra.mxu0 0.0
        %1063 = vmatprep.subr.mxu0 0.0
        %1064 = vmatpush1.msra.mxu0 0.0
        %1065 = vmatprep.subr.mxu0 0.0
        %1066 = vmatpush1.msra.mxu0 0.0
        %1067 = vmatprep.subr.mxu0 0.0
        %1068 = vmatpush1.msra.mxu0 0.0
        %1069 = vmatprep.subr.mxu0 0.0
        %1070 = vmatpush1.msra.mxu0 0.0
        %1071 = vmatprep.subr.mxu0 0.0
        %1072 = vmatpush1.msra.mxu0 0.0
        %1073 = vmatprep.subr.mxu0 0.0
        %1074 = vmatpush1.msra.mxu0 0.0
        %1075 = vmatprep.subr.mxu0 0.0
        %1076 = vmatpush1.msra.mxu0 0.0
        %1077 = vmatprep.subr.mxu0 0.0
        %1078 = vmatpush1.msra.mxu0 0.0
        %1079 = vmatprep.mubr.f32.mxu0 0.0
        %1080 = vmatmul.mubr.f32.gmra.mrb[0].mxu0 %v223
        %v1081 = vpop.f32.mrb[0].mxu0
        %v1082 = vadd.f32 0.0, %v1081
        %v1083 = vpop.f32.mrb[0].mxu0
        %v1084 = vadd.f32 0.0, %v1083
        %1085 = vmatprep.mubr.f32.mxu0 0.0
        %1086 = vmatmul.mubr.f32.gmra.mrb[0].mxu0 %v226
        %v1087 = vpop.f32.mrb[0].mxu0
        %v1088 = vadd.f32 0.0, %v1087
        %v1089 = vpop.f32.mrb[0].mxu0
        %v1090 = vadd.f32 0.0, %v1089
        %1091 = vdwg.mxu0
        %v1092 = vtanh.pop %v1082
        %v1093 = vtanh.pop %v1084
        %v1094 = vtanh.pop %v1088
        %v1095 = vtanh.pop %v1090
        %v1096 = vmul.f32 %v1092, %v312
        %v1097 = vmul.f32 %v1093, %v312
        %v1098 = vmul.f32 %v1094, %v317
        %v1099 = vmul.f32 %v1095, %v317
        %v1100 = vadd.f32 %v1096, %v1098
        %v1101 = vrot.slane %v1100, 4
        %v1102 = vadd.f32 %v1100, %v1101
        %v1103 = vrot.slane %v1102, 2
        %v1104 = vadd.f32 %v1102, %v1103
        %v1105 = vrot.slane %v1104, 1
        %v1106 = vadd.f32 %v1104, %v1105
        %v1107 = vadd.f32 %v1097, %v1099
        %v1108 = vrot.slane %v1107, 4
        %v1109 = vadd.f32 %v1107, %v1108
        %v1110 = vrot.slane %v1109, 2
        %v1111 = vadd.f32 %v1109, %v1110
        %v1112 = vrot.slane %v1111, 1
        %v1113 = vadd.f32 %v1111, %v1112
        %v1116 = vcombine.low %v1106, %v1113
        %v1118 = vunpack.c.l.s4 1966171168
        %v1119 = vunpack.c.0.s8 %v1118
        %v1120 = vlaneseq
        %v1121 = vshrl.u32 %v1120, 7
        %v1122 = vsub.s32 %v1119, %v1121
        %v1123 = vrot.slane %v1116, %v1122
        %v1125 = vunpack.c.l.s4 1966171168
        %v1126 = vunpack.c.0.s8 %v1125
        %v1127 = vlaneseq
        %v1128 = vshrl.u32 %v1127, 7
        %v1129 = vsub.s32 %v1126, %v1128
        %v1130 = vrot.slane %v1123, %v1129
        %s1132 = scalar_lea.vmem [#allocation2], 6
        %1133 = vst.msk [vmem:[%s1132] ss:$8 sm:$0x3] %vm358, %v1130
        %1134 = vst.msk [vmem:[%s1132] ss:$8 sm:$0x0] %vm358, %v1130
        %s1135 = scalar_lea.vmem %s184, 448 [#allocation3]
        %v1136 = vld [vmem:[%s1135] sm:$0xff]
        %v1137 = vld [vmem:[%s1135 + $0x8] sm:$0xff]
        %v1138 = vld [vmem:[%s1135 + $0x10] sm:$0xff]
        %v1139 = vld [vmem:[%s1135 + $0x18] sm:$0xff]
        %v1140 = vld [vmem:[%s1135 + $0x20] sm:$0xff]
        %v1141 = vld [vmem:[%s1135 + $0x28] sm:$0xff]
        %v1142 = vld [vmem:[%s1135 + $0x30] sm:$0xff]
        %v1143 = vld [vmem:[%s1135 + $0x38] sm:$0xff]
        %1144 = vmatprep.subr.mxu0 %v1137
        %1145 = vmatpush1.msra.mxu0 %v1136
        %1146 = vmatprep.subr.mxu0 %v1139
        %1147 = vmatpush1.msra.mxu0 %v1138
        %1148 = vmatprep.subr.mxu0 %v1141
        %1149 = vmatpush1.msra.mxu0 %v1140
        %1150 = vmatprep.subr.mxu0 %v1143
        %1151 = vmatpush1.msra.mxu0 %v1142
        %1152 = vmatprep.subr.mxu0 0.0
        %1153 = vmatpush1.msra.mxu0 0.0
        %1154 = vmatprep.subr.mxu0 0.0
        %1155 = vmatpush1.msra.mxu0 0.0
        %1156 = vmatprep.subr.mxu0 0.0
        %1157 = vmatpush1.msra.mxu0 0.0
        %1158 = vmatprep.subr.mxu0 0.0
        %1159 = vmatpush1.msra.mxu0 0.0
        %1160 = vmatprep.subr.mxu0 0.0
        %1161 = vmatpush1.msra.mxu0 0.0
        %1162 = vmatprep.subr.mxu0 0.0
        %1163 = vmatpush1.msra.mxu0 0.0
        %1164 = vmatprep.subr.mxu0 0.0
        %1165 = vmatpush1.msra.mxu0 0.0
        %1166 = vmatprep.subr.mxu0 0.0
        %1167 = vmatpush1.msra.mxu0 0.0
        %1168 = vmatprep.subr.mxu0 0.0
        %1169 = vmatpush1.msra.mxu0 0.0
        %1170 = vmatprep.subr.mxu0 0.0
        %1171 = vmatpush1.msra.mxu0 0.0
        %1172 = vmatprep.subr.mxu0 0.0
        %1173 = vmatpush1.msra.mxu0 0.0
        %1174 = vmatprep.subr.mxu0 0.0
        %1175 = vmatpush1.msra.mxu0 0.0
        %1176 = vmatprep.subr.mxu0 0.0
        %1177 = vmatpush1.msra.mxu0 0.0
        %1178 = vmatprep.subr.mxu0 0.0
        %1179 = vmatpush1.msra.mxu0 0.0
        %1180 = vmatprep.subr.mxu0 0.0
        %1181 = vmatpush1.msra.mxu0 0.0
        %1182 = vmatprep.subr.mxu0 0.0
        %1183 = vmatpush1.msra.mxu0 0.0
        %1184 = vmatprep.subr.mxu0 0.0
        %1185 = vmatpush1.msra.mxu0 0.0
        %1186 = vmatprep.subr.mxu0 0.0
        %1187 = vmatpush1.msra.mxu0 0.0
        %1188 = vmatprep.subr.mxu0 0.0
        %1189 = vmatpush1.msra.mxu0 0.0
        %1190 = vmatprep.subr.mxu0 0.0
        %1191 = vmatpush1.msra.mxu0 0.0
        %1192 = vmatprep.subr.mxu0 0.0
        %1193 = vmatpush1.msra.mxu0 0.0
        %1194 = vmatprep.subr.mxu0 0.0
        %1195 = vmatpush1.msra.mxu0 0.0
        %1196 = vmatprep.subr.mxu0 0.0
        %1197 = vmatpush1.msra.mxu0 0.0
        %1198 = vmatprep.subr.mxu0 0.0
        %1199 = vmatpush1.msra.mxu0 0.0
        %1200 = vmatprep.subr.mxu0 0.0
        %1201 = vmatpush1.msra.mxu0 0.0
        %1202 = vmatprep.subr.mxu0 0.0
        %1203 = vmatpush1.msra.mxu0 0.0
        %1204 = vmatprep.subr.mxu0 0.0
        %1205 = vmatpush1.msra.mxu0 0.0
        %1206 = vmatprep.subr.mxu0 0.0
        %1207 = vmatpush1.msra.mxu0 0.0
        %1208 = vmatprep.mubr.f32.mxu0 0.0
        %1209 = vmatmul.mubr.f32.gmra.mrb[0].mxu0 %v223
        %v1210 = vpop.f32.mrb[0].mxu0
        %v1211 = vadd.f32 0.0, %v1210
        %v1212 = vpop.f32.mrb[0].mxu0
        %v1213 = vadd.f32 0.0, %v1212
        %1214 = vmatprep.mubr.f32.mxu0 0.0
        %1215 = vmatmul.mubr.f32.gmra.mrb[0].mxu0 %v226
        %v1216 = vpop.f32.mrb[0].mxu0
        %v1217 = vadd.f32 0.0, %v1216
        %v1218 = vpop.f32.mrb[0].mxu0
        %v1219 = vadd.f32 0.0, %v1218
        %1220 = vdwg.mxu0
        %v1221 = vtanh.pop %v1211
        %v1222 = vtanh.pop %v1213
        %v1223 = vtanh.pop %v1217
        %v1224 = vtanh.pop %v1219
        %v1225 = vmul.f32 %v1221, %v312
        %v1226 = vmul.f32 %v1222, %v312
        %v1227 = vmul.f32 %v1223, %v317
        %v1228 = vmul.f32 %v1224, %v317
        %v1229 = vadd.f32 %v1225, %v1227
        %v1230 = vrot.slane %v1229, 4
        %v1231 = vadd.f32 %v1229, %v1230
        %v1232 = vrot.slane %v1231, 2
        %v1233 = vadd.f32 %v1231, %v1232
        %v1234 = vrot.slane %v1233, 1
        %v1235 = vadd.f32 %v1233, %v1234
        %v1236 = vadd.f32 %v1226, %v1228
        %v1237 = vrot.slane %v1236, 4
        %v1238 = vadd.f32 %v1236, %v1237
        %v1239 = vrot.slane %v1238, 2
        %v1240 = vadd.f32 %v1238, %v1239
        %v1241 = vrot.slane %v1240, 1
        %v1242 = vadd.f32 %v1240, %v1241
        %v1245 = vcombine.low %v1235, %v1242
        %v1247 = vunpack.c.l.s4 1966171168
        %v1248 = vunpack.c.0.s8 %v1247
        %v1249 = vlaneseq
        %v1250 = vshrl.u32 %v1249, 7
        %v1251 = vsub.s32 %v1248, %v1250
        %v1252 = vrot.slane %v1245, %v1251
        %v1254 = vunpack.c.l.s4 1966171168
        %v1255 = vunpack.c.0.s8 %v1254
        %v1256 = vlaneseq
        %v1257 = vshrl.u32 %v1256, 7
        %v1258 = vsub.s32 %v1255, %v1257
        %v1259 = vrot.slane %v1252, %v1258
        %s1261 = scalar_lea.vmem [#allocation2], 7
        %1262 = vst.msk [vmem:[%s1261] ss:$8 sm:$0x3] %vm358, %v1259
        %1263 = vst.msk [vmem:[%s1261] ss:$8 sm:$0x0] %vm358, %v1259
        %v1264 = vld [vmem:[#allocation2] sm:$0xff]
        %v1265 = vld [vmem:[#allocation2 + $0x8] sm:$0xff]
        %v1266 = vrot.slane %v1264, 4
        %v1267 = vmax.f32 %v1264, %v1266
        %v1268 = vrot.slane %v1267, 2
        %v1269 = vmax.f32 %v1267, %v1268
        %v1270 = vrot.slane %v1269, 1
        %v1271 = vmax.f32 %v1269, %v1270
        %v1272 = vrot.slane %v1265, 4
        %v1273 = vmax.f32 %v1265, %v1272
        %v1274 = vrot.slane %v1273, 2
        %v1275 = vmax.f32 %v1273, %v1274
        %v1276 = vrot.slane %v1275, 1
        %v1277 = vmax.f32 %v1275, %v1276
        %v1278 = vsub.f32 %v1264, %v1271
        %v1279 = vsub.f32 %v1265, %v1277
        %v1280 = vmul.f32 %v1278, 1.442695
        %v1281 = vpow.pop %v1280
        %v1282 = vmul.f32 %v1279, 1.442695
        %v1283 = vpow.pop %v1282
        %v1284 = vrot.slane %v1281, 4
        %v1285 = vadd.f32 %v1281, %v1284
        %v1286 = vrot.slane %v1285, 2
        %v1287 = vadd.f32 %v1285, %v1286
        %v1288 = vrot.slane %v1287, 1
        %v1289 = vadd.f32 %v1287, %v1288
        %v1290 = vrot.slane %v1283, 4
        %v1291 = vadd.f32 %v1283, %v1290
        %v1292 = vrot.slane %v1291, 2
        %v1293 = vadd.f32 %v1291, %v1292
        %v1294 = vrot.slane %v1293, 1
        %v1295 = vadd.f32 %v1293, %v1294
        %v1296 = vrcp.pop %v1289
        %v1297 = vrcp.pop %v1295
        %v1298 = vmul.f32 %v1281, %v1296
        %v1299 = vmul.f32 %v1283, %v1297
        %1300 = vst [vmem:[#allocation2] sm:$0xff] %v1298
        %1301 = vst [vmem:[#allocation2 + $0x8] sm:$0xff] %v1299
        %v1302 = vld [vmem:[#allocation2] ss:$8 sm:$0x3]
        %v1303 = vld [vmem:[%s184] sm:$0xff]
        %v1304 = vld [vmem:[%s184 + $0x8] sm:$0xff]
        %v1305 = vld [vmem:[%s184 + $0x10] sm:$0xff]
        %v1306 = vld [vmem:[%s184 + $0x18] sm:$0xff]
        %v1307 = vld [vmem:[%s184 + $0x20] sm:$0xff]
        %v1308 = vld [vmem:[%s184 + $0x28] sm:$0xff]
        %v1309 = vld [vmem:[%s184 + $0x30] sm:$0xff]
        %v1310 = vld [vmem:[%s184 + $0x38] sm:$0xff]
        %v1312 = vlaneseq
        %v1313 = vshrl.u32 %v1312, 7
        %v1314 = vsub.s32 0, %v1313
        %v1315 = vrot.slane %v1302, %v1314
        %v1316 = vlaneseq
        %v1317 = vshrl.u32 %v1316, 7
        %v1318 = vsub.s32 1, %v1317
        %v1319 = vrot.slane %v1302, %v1318
        %v1322 = vmul.f32 %v1315, %v1303
        %v1323 = vmul.f32 %v1319, %v1304
        %v1324 = vmul.f32 %v1315, %v1305
        %v1325 = vmul.f32 %v1319, %v1306
        %v1326 = vmul.f32 %v1315, %v1307
        %v1327 = vmul.f32 %v1319, %v1308
        %v1328 = vmul.f32 %v1315, %v1309
        %v1329 = vmul.f32 %v1319, %v1310
        %1330 = vst [vmem:[%s206] sm:$0xff] %v1322
        %1331 = vst [vmem:[%s206 + $0x8] sm:$0xff] %v1323
        %1332 = vst [vmem:[%s206 + $0x10] sm:$0xff] %v1324
        %1333 = vst [vmem:[%s206 + $0x18] sm:$0xff] %v1325
        %1334 = vst [vmem:[%s206 + $0x20] sm:$0xff] %v1326
        %1335 = vst [vmem:[%s206 + $0x28] sm:$0xff] %v1327
        %1336 = vst [vmem:[%s206 + $0x30] sm:$0xff] %v1328
        %1337 = vst [vmem:[%s206 + $0x38] sm:$0xff] %v1329
        %v1338 = vld [vmem:[%s487] ss:$8 sm:$0x3]
        %v1339 = vld [vmem:[%s361] sm:$0xff]
        %v1340 = vld [vmem:[%s361 + $0x8] sm:$0xff]
        %v1341 = vld [vmem:[%s361 + $0x10] sm:$0xff]
        %v1342 = vld [vmem:[%s361 + $0x18] sm:$0xff]
        %v1343 = vld [vmem:[%s361 + $0x20] sm:$0xff]
        %v1344 = vld [vmem:[%s361 + $0x28] sm:$0xff]
        %v1345 = vld [vmem:[%s361 + $0x30] sm:$0xff]
        %v1346 = vld [vmem:[%s361 + $0x38] sm:$0xff]
        %v1348 = vlaneseq
        %v1349 = vshrl.u32 %v1348, 7
        %v1350 = vsub.s32 0, %v1349
        %v1351 = vrot.slane %v1338, %v1350
        %v1352 = vlaneseq
        %v1353 = vshrl.u32 %v1352, 7
        %v1354 = vsub.s32 1, %v1353
        %v1355 = vrot.slane %v1338, %v1354
        %v1358 = vmul.f32 %v1351, %v1339
        %v1359 = vmul.f32 %v1355, %v1340
        %v1360 = vmul.f32 %v1351, %v1341
        %v1361 = vmul.f32 %v1355, %v1342
        %v1362 = vmul.f32 %v1351, %v1343
        %v1363 = vmul.f32 %v1355, %v1344
        %v1364 = vmul.f32 %v1351, %v1345
        %v1365 = vmul.f32 %v1355, %v1346
        %s1366 = scalar_lea.vmem %s206, 64 [#allocation6]
        %1367 = vst [vmem:[%s1366] sm:$0xff] %v1358
        %1368 = vst [vmem:[%s1366 + $0x8] sm:$0xff] %v1359
        %1369 = vst [vmem:[%s1366 + $0x10] sm:$0xff] %v1360
        %1370 = vst [vmem:[%s1366 + $0x18] sm:$0xff] %v1361
        %1371 = vst [vmem:[%s1366 + $0x20] sm:$0xff] %v1362
        %1372 = vst [vmem:[%s1366 + $0x28] sm:$0xff] %v1363
        %1373 = vst [vmem:[%s1366 + $0x30] sm:$0xff] %v1364
        %1374 = vst [vmem:[%s1366 + $0x38] sm:$0xff] %v1365
        %v1375 = vld [vmem:[%s616] ss:$8 sm:$0x3]
        %v1376 = vld [vmem:[%s490] sm:$0xff]
        %v1377 = vld [vmem:[%s490 + $0x8] sm:$0xff]
        %v1378 = vld [vmem:[%s490 + $0x10] sm:$0xff]
        %v1379 = vld [vmem:[%s490 + $0x18] sm:$0xff]
        %v1380 = vld [vmem:[%s490 + $0x20] sm:$0xff]
        %v1381 = vld [vmem:[%s490 + $0x28] sm:$0xff]
        %v1382 = vld [vmem:[%s490 + $0x30] sm:$0xff]
        %v1383 = vld [vmem:[%s490 + $0x38] sm:$0xff]
        %v1385 = vlaneseq
        %v1386 = vshrl.u32 %v1385, 7
        %v1387 = vsub.s32 0, %v1386
        %v1388 = vrot.slane %v1375, %v1387
        %v1389 = vlaneseq
        %v1390 = vshrl.u32 %v1389, 7
        %v1391 = vsub.s32 1, %v1390
        %v1392 = vrot.slane %v1375, %v1391
        %v1395 = vmul.f32 %v1388, %v1376
        %v1396 = vmul.f32 %v1392, %v1377
        %v1397 = vmul.f32 %v1388, %v1378
        %v1398 = vmul.f32 %v1392, %v1379
        %v1399 = vmul.f32 %v1388, %v1380
        %v1400 = vmul.f32 %v1392, %v1381
        %v1401 = vmul.f32 %v1388, %v1382
        %v1402 = vmul.f32 %v1392, %v1383
        %s1403 = scalar_lea.vmem %s206, 128 [#allocation6]
        %1404 = vst [vmem:[%s1403] sm:$0xff] %v1395
        %1405 = vst [vmem:[%s1403 + $0x8] sm:$0xff] %v1396
        %1406 = vst [vmem:[%s1403 + $0x10] sm:$0xff] %v1397
        %1407 = vst [vmem:[%s1403 + $0x18] sm:$0xff] %v1398
        %1408 = vst [vmem:[%s1403 + $0x20] sm:$0xff] %v1399
        %1409 = vst [vmem:[%s1403 + $0x28] sm:$0xff] %v1400
        %1410 = vst [vmem:[%s1403 + $0x30] sm:$0xff] %v1401
        %1411 = vst [vmem:[%s1403 + $0x38] sm:$0xff] %v1402
        %v1412 = vld [vmem:[%s745] ss:$8 sm:$0x3]
        %v1413 = vld [vmem:[%s619] sm:$0xff]
        %v1414 = vld [vmem:[%s619 + $0x8] sm:$0xff]
        %v1415 = vld [vmem:[%s619 + $0x10] sm:$0xff]
        %v1416 = vld [vmem:[%s619 + $0x18] sm:$0xff]
        %v1417 = vld [vmem:[%s619 + $0x20] sm:$0xff]
        %v1418 = vld [vmem:[%s619 + $0x28] sm:$0xff]
        %v1419 = vld [vmem:[%s619 + $0x30] sm:$0xff]
        %v1420 = vld [vmem:[%s619 + $0x38] sm:$0xff]
        %v1422 = vlaneseq
        %v1423 = vshrl.u32 %v1422, 7
        %v1424 = vsub.s32 0, %v1423
        %v1425 = vrot.slane %v1412, %v1424
        %v1426 = vlaneseq
        %v1427 = vshrl.u32 %v1426, 7
        %v1428 = vsub.s32 1, %v1427
        %v1429 = vrot.slane %v1412, %v1428
        %v1432 = vmul.f32 %v1425, %v1413
        %v1433 = vmul.f32 %v1429, %v1414
        %v1434 = vmul.f32 %v1425, %v1415
        %v1435 = vmul.f32 %v1429, %v1416
        %v1436 = vmul.f32 %v1425, %v1417
        %v1437 = vmul.f32 %v1429, %v1418
        %v1438 = vmul.f32 %v1425, %v1419
        %v1439 = vmul.f32 %v1429, %v1420
        %s1440 = scalar_lea.vmem %s206, 192 [#allocation6]
        %1441 = vst [vmem:[%s1440] sm:$0xff] %v1432
        %1442 = vst [vmem:[%s1440 + $0x8] sm:$0xff] %v1433
        %1443 = vst [vmem:[%s1440 + $0x10] sm:$0xff] %v1434
        %1444 = vst [vmem:[%s1440 + $0x18] sm:$0xff] %v1435
        %1445 = vst [vmem:[%s1440 + $0x20] sm:$0xff] %v1436
        %1446 = vst [vmem:[%s1440 + $0x28] sm:$0xff] %v1437
        %1447 = vst [vmem:[%s1440 + $0x30] sm:$0xff] %v1438
        %1448 = vst [vmem:[%s1440 + $0x38] sm:$0xff] %v1439
        %v1449 = vld [vmem:[%s874] ss:$8 sm:$0x3]
        %v1450 = vld [vmem:[%s748] sm:$0xff]
        %v1451 = vld [vmem:[%s748 + $0x8] sm:$0xff]
        %v1452 = vld [vmem:[%s748 + $0x10] sm:$0xff]
        %v1453 = vld [vmem:[%s748 + $0x18] sm:$0xff]
        %v1454 = vld [vmem:[%s748 + $0x20] sm:$0xff]
        %v1455 = vld [vmem:[%s748 + $0x28] sm:$0xff]
        %v1456 = vld [vmem:[%s748 + $0x30] sm:$0xff]
        %v1457 = vld [vmem:[%s748 + $0x38] sm:$0xff]
        %v1459 = vlaneseq
        %v1460 = vshrl.u32 %v1459, 7
        %v1461 = vsub.s32 0, %v1460
        %v1462 = vrot.slane %v1449, %v1461
        %v1463 = vlaneseq
        %v1464 = vshrl.u32 %v1463, 7
        %v1465 = vsub.s32 1, %v1464
        %v1466 = vrot.slane %v1449, %v1465
        %v1469 = vmul.f32 %v1462, %v1450
        %v1470 = vmul.f32 %v1466, %v1451
        %v1471 = vmul.f32 %v1462, %v1452
        %v1472 = vmul.f32 %v1466, %v1453
        %v1473 = vmul.f32 %v1462, %v1454
        %v1474 = vmul.f32 %v1466, %v1455
        %v1475 = vmul.f32 %v1462, %v1456
        %v1476 = vmul.f32 %v1466, %v1457
        %s1477 = scalar_lea.vmem %s206, 256 [#allocation6]
        %1478 = vst [vmem:[%s1477] sm:$0xff] %v1469
        %1479 = vst [vmem:[%s1477 + $0x8] sm:$0xff] %v1470
        %1480 = vst [vmem:[%s1477 + $0x10] sm:$0xff] %v1471
        %1481 = vst [vmem:[%s1477 + $0x18] sm:$0xff] %v1472
        %1482 = vst [vmem:[%s1477 + $0x20] sm:$0xff] %v1473
        %1483 = vst [vmem:[%s1477 + $0x28] sm:$0xff] %v1474
        %1484 = vst [vmem:[%s1477 + $0x30] sm:$0xff] %v1475
        %1485 = vst [vmem:[%s1477 + $0x38] sm:$0xff] %v1476
        %v1486 = vld [vmem:[%s1003] ss:$8 sm:$0x3]
        %v1487 = vld [vmem:[%s877] sm:$0xff]
        %v1488 = vld [vmem:[%s877 + $0x8] sm:$0xff]
        %v1489 = vld [vmem:[%s877 + $0x10] sm:$0xff]
        %v1490 = vld [vmem:[%s877 + $0x18] sm:$0xff]
        %v1491 = vld [vmem:[%s877 + $0x20] sm:$0xff]
        %v1492 = vld [vmem:[%s877 + $0x28] sm:$0xff]
        %v1493 = vld [vmem:[%s877 + $0x30] sm:$0xff]
        %v1494 = vld [vmem:[%s877 + $0x38] sm:$0xff]
        %v1496 = vlaneseq
        %v1497 = vshrl.u32 %v1496, 7
        %v1498 = vsub.s32 0, %v1497
        %v1499 = vrot.slane %v1486, %v1498
        %v1500 = vlaneseq
        %v1501 = vshrl.u32 %v1500, 7
        %v1502 = vsub.s32 1, %v1501
        %v1503 = vrot.slane %v1486, %v1502
        %v1506 = vmul.f32 %v1499, %v1487
        %v1507 = vmul.f32 %v1503, %v1488
        %v1508 = vmul.f32 %v1499, %v1489
        %v1509 = vmul.f32 %v1503, %v1490
        %v1510 = vmul.f32 %v1499, %v1491
        %v1511 = vmul.f32 %v1503, %v1492
        %v1512 = vmul.f32 %v1499, %v1493
        %v1513 = vmul.f32 %v1503, %v1494
        %s1514 = scalar_lea.vmem %s206, 320 [#allocation6]
        %1515 = vst [vmem:[%s1514] sm:$0xff] %v1506
        %1516 = vst [vmem:[%s1514 + $0x8] sm:$0xff] %v1507
        %1517 = vst [vmem:[%s1514 + $0x10] sm:$0xff] %v1508
        %1518 = vst [vmem:[%s1514 + $0x18] sm:$0xff] %v1509
        %1519 = vst [vmem:[%s1514 + $0x20] sm:$0xff] %v1510
        %1520 = vst [vmem:[%s1514 + $0x28] sm:$0xff] %v1511
        %1521 = vst [vmem:[%s1514 + $0x30] sm:$0xff] %v1512
        %1522 = vst [vmem:[%s1514 + $0x38] sm:$0xff] %v1513
        %v1523 = vld [vmem:[%s1132] ss:$8 sm:$0x3]
        %v1524 = vld [vmem:[%s1006] sm:$0xff]
        %v1525 = vld [vmem:[%s1006 + $0x8] sm:$0xff]
        %v1526 = vld [vmem:[%s1006 + $0x10] sm:$0xff]
        %v1527 = vld [vmem:[%s1006 + $0x18] sm:$0xff]
        %v1528 = vld [vmem:[%s1006 + $0x20] sm:$0xff]
        %v1529 = vld [vmem:[%s1006 + $0x28] sm:$0xff]
        %v1530 = vld [vmem:[%s1006 + $0x30] sm:$0xff]
        %v1531 = vld [vmem:[%s1006 + $0x38] sm:$0xff]
        %v1533 = vlaneseq
        %v1534 = vshrl.u32 %v1533, 7
        %v1535 = vsub.s32 0, %v1534
        %v1536 = vrot.slane %v1523, %v1535
        %v1537 = vlaneseq
        %v1538 = vshrl.u32 %v1537, 7
        %v1539 = vsub.s32 1, %v1538
        %v1540 = vrot.slane %v1523, %v1539
        %v1543 = vmul.f32 %v1536, %v1524
        %v1544 = vmul.f32 %v1540, %v1525
        %v1545 = vmul.f32 %v1536, %v1526
        %v1546 = vmul.f32 %v1540, %v1527
        %v1547 = vmul.f32 %v1536, %v1528
        %v1548 = vmul.f32 %v1540, %v1529
        %v1549 = vmul.f32 %v1536, %v1530
        %v1550 = vmul.f32 %v1540, %v1531
        %s1551 = scalar_lea.vmem %s206, 384 [#allocation6]
        %1552 = vst [vmem:[%s1551] sm:$0xff] %v1543
        %1553 = vst [vmem:[%s1551 + $0x8] sm:$0xff] %v1544
        %1554 = vst [vmem:[%s1551 + $0x10] sm:$0xff] %v1545
        %1555 = vst [vmem:[%s1551 + $0x18] sm:$0xff] %v1546
        %1556 = vst [vmem:[%s1551 + $0x20] sm:$0xff] %v1547
        %1557 = vst [vmem:[%s1551 + $0x28] sm:$0xff] %v1548
        %1558 = vst [vmem:[%s1551 + $0x30] sm:$0xff] %v1549
        %1559 = vst [vmem:[%s1551 + $0x38] sm:$0xff] %v1550
        %v1560 = vld [vmem:[%s1261] ss:$8 sm:$0x3]
        %v1561 = vld [vmem:[%s1135] sm:$0xff]
        %v1562 = vld [vmem:[%s1135 + $0x8] sm:$0xff]
        %v1563 = vld [vmem:[%s1135 + $0x10] sm:$0xff]
        %v1564 = vld [vmem:[%s1135 + $0x18] sm:$0xff]
        %v1565 = vld [vmem:[%s1135 + $0x20] sm:$0xff]
        %v1566 = vld [vmem:[%s1135 + $0x28] sm:$0xff]
        %v1567 = vld [vmem:[%s1135 + $0x30] sm:$0xff]
        %v1568 = vld [vmem:[%s1135 + $0x38] sm:$0xff]
        %v1570 = vlaneseq
        %v1571 = vshrl.u32 %v1570, 7
        %v1572 = vsub.s32 0, %v1571
        %v1573 = vrot.slane %v1560, %v1572
        %v1574 = vlaneseq
        %v1575 = vshrl.u32 %v1574, 7
        %v1576 = vsub.s32 1, %v1575
        %v1577 = vrot.slane %v1560, %v1576
        %v1580 = vmul.f32 %v1573, %v1561
        %v1581 = vmul.f32 %v1577, %v1562
        %v1582 = vmul.f32 %v1573, %v1563
        %v1583 = vmul.f32 %v1577, %v1564
        %v1584 = vmul.f32 %v1573, %v1565
        %v1585 = vmul.f32 %v1577, %v1566
        %v1586 = vmul.f32 %v1573, %v1567
        %v1587 = vmul.f32 %v1577, %v1568
        %s1588 = scalar_lea.vmem %s206, 448 [#allocation6]
        %1589 = vst [vmem:[%s1588] sm:$0xff] %v1580
        %1590 = vst [vmem:[%s1588 + $0x8] sm:$0xff] %v1581
        %1591 = vst [vmem:[%s1588 + $0x10] sm:$0xff] %v1582
        %1592 = vst [vmem:[%s1588 + $0x18] sm:$0xff] %v1583
        %1593 = vst [vmem:[%s1588 + $0x20] sm:$0xff] %v1584
        %1594 = vst [vmem:[%s1588 + $0x28] sm:$0xff] %v1585
        %1595 = vst [vmem:[%s1588 + $0x30] sm:$0xff] %v1586
        %1596 = vst [vmem:[%s1588 + $0x38] sm:$0xff] %v1587
        %s1597 = sand.u32 %s112, 1
        %s1598 = scalar_lea.sflag [#allocation5], %s1597
        %s1599 = sand.u32 %s112, 1
        %s1600 = smul.addr %s1599, 512
        %s1601 = scalar_lea.vmem [#allocation6], %s1600
        // Predicated region
        $region37: #{tpu_custom_call.1} parent=31 // pred_check
          %p1602 = pneg %p122
        $region38: #{tpu_custom_call.1} parent=31 // pred_check_branch
          %1604 = sbr.rel (%p1602) target = $region40
        $region39: #{tpu_custom_call.1} parent=31 // pred_region
          %s1605 = smul.u32 2, %s25
          %s1607 = ssub.s32 8192, 8192
          %1608 = vsyncadd %s1598, %s1607
          %s1609 = smul.addr %s24, 64
          %s1610 = sadd.s32 %s1605, %s1609
          %s1611 = smul.addr %s1610, 128
          %s1612 = scalar_lea.hbm %s3, %s1611
          %s1613 = sshll.u32 %s1601, 4
          %s1614 = int_to_ptr.vmem [resolvable:$true] %s1613
          %1619 = dma.vmem_to_hbm [thread:$0]  %s1614, 8192, %s1612, %s1598, 256, 256, 16
        $region40: #{tpu_custom_call.1} parent=31 // pred_fallthru
          _
      $region32: #{tpu_custom_call.1} parent=5 // pred_fallthru
        _
      %p1620 = scmp.le.s32.totalorder 2, %s15
      // Predicated region
      $region41: #{tpu_custom_call.1} parent=5 // pred_check
        %p1621 = pneg %p1620
      $region42: #{tpu_custom_call.1} parent=5 // pred_check_branch
        %1623 = sbr.rel (%p1621) target = $region44
      $region43: #{tpu_custom_call.1} parent=5 // pred_region
        %s1624 = ssub.s32 %s15, 2
        // Predicated region
        $region45: #{tpu_custom_call.1} parent=43 // pred_check
          %p1625 = pneg %p128
        $region46: #{tpu_custom_call.1} parent=43 // pred_check_branch
          %1627 = sbr.rel (%p1625) target = $region48
        $region47: #{tpu_custom_call.1} parent=43 // pred_region
          %s1628 = sand.u32 %s113, 1
          %s1629 = scalar_lea.sflag [#allocation5], %s1628
          %s1630 = sand.u32 %s113, 1
          %s1631 = smul.addr %s1630, 512
          %s1632 = scalar_lea.vmem [#allocation6], %s1631
          %1633 = dma.done %s1629, 8192
        $region48: #{tpu_custom_call.1} parent=43 // pred_fallthru
          _
      $region44: #{tpu_custom_call.1} parent=5 // pred_fallthru
        _
    $region6: #{tpu_custom_call.1} parent=1 // loop_footer
      %s19 = sadd.s32 1, %s15
    $region7: #{tpu_custom_call.1} parent=1 // loop_footer_branch
      %14 = sbr.rel target = $region3
    $region8: #{tpu_custom_call.1} parent=1 // loop_exit
      _
    %1634 = vsyncpa [#allocation4], 1
    %s1635 = scalar_lea.sflag [#allocation4], 1
    %1636 = vsyncpa %s1635, 1
    %1637 = vsyncpa [#allocation5], 1
    %s1638 = scalar_lea.sflag [#allocation5], 1
    %1639 = vsyncpa %s1638, 1

</llo_original>
